<compile_context>
chip_gen: v5e
topology: v5e:2x2
jax: 0.10.0
libtpu: 0.0.40
codegen_flags: <defaults>
</compile_context>

<pallas_src>
import functools
import math

import jax
import jax.numpy as jnp
import numpy as np
from jax.experimental import pallas as pl
from jax.experimental.pallas import tpu as pltpu


# ----------------------------- Pallas kernel (one decoder block) -----------------------------

def _layernorm(v, g, b):
    mu = jnp.mean(v, axis=-1, keepdims=True)
    var = jnp.mean(jnp.square(v - mu), axis=-1, keepdims=True)
    return (v - mu) * jax.lax.rsqrt(var + 1e-5) * g + b


def _decoder_block_kernel(x_ref,
                          wq_ref, wk_ref, wv_ref, wo_ref, bo_ref,
                          g1_ref, be1_ref, g3_ref, be3_ref,
                          w1_ref, b1_ref, w2_ref, b2_ref,
                          o_ref, *, nheads, dk, compute_dtype):
    Bt, S, D = x_ref.shape
    R = Bt * S
    cd = compute_dtype

    x = x_ref[...].reshape(R, D)                       # (R, D) f32 residual stream

    # ---------------- self-attention sub-block ----------------
    n1 = _layernorm(x, g1_ref[...], be1_ref[...])
    n1c = n1.astype(cd)
    # QKV projections on the full (batch*seq, D) slab -> large MXU M dimension.
    q = jnp.dot(n1c, wq_ref[...], preferred_element_type=jnp.float32)
    k = jnp.dot(n1c, wk_ref[...], preferred_element_type=jnp.float32)
    v = jnp.dot(n1c, wv_ref[...], preferred_element_type=jnp.float32)
    # fold 1/sqrt(dk) into q once instead of scaling every (S, S) score tile per head
    q = (q * jnp.float32(1.0 / math.sqrt(dk))).astype(cd)
    k = k.astype(cd)
    v = v.astype(cd)

    # additive causal bias, built once (== torch masked_fill(~tril, -1e10) after softmax)
    rows = jax.lax.broadcasted_iota(jnp.int32, (S, S), 0)
    cols = jax.lax.broadcasted_iota(jnp.int32, (S, S), 1)
    mask_bias = jnp.where(rows >= cols, 0.0, -1e10).astype(jnp.float32)
    mask_bias = jnp.broadcast_to(mask_bias.reshape(1, S, S), (Bt, S, S))  # hoisted broadcast

    # Accumulate the output projection head-by-head (block-matmul identity):
    #   concat_h(ctx_h) @ Wo == sum_h ctx_h @ Wo[h*dk:(h+1)*dk, :]
    # -> no lane concatenate, only one head's (Bt, S, S) score tile live at a time.
    attn_acc = jnp.zeros((R, D), jnp.float32)
    for h in range(nheads):                            # static unrolled loop over heads
        sl = slice(h * dk, (h + 1) * dk)
        qh = q[:, sl].reshape(Bt, S, dk)
        kh = k[:, sl].reshape(Bt, S, dk)
        vh = v[:, sl].reshape(Bt, S, dk)
        s = jnp.einsum("bqd,bkd->bqk", qh, kh,
                       preferred_element_type=jnp.float32)
        s = s + mask_bias
        s = s - jnp.max(s, axis=-1, keepdims=True)
        p = jnp.exp(s)
        p = p * pl.reciprocal(jnp.sum(p, axis=-1, keepdims=True), approx=True)
        oh = jnp.einsum("bqk,bkd->bqd", p.astype(cd), vh,
                        preferred_element_type=jnp.float32)
        attn_acc = attn_acc + jnp.dot(oh.reshape(R, dk).astype(cd), wo_ref[h],
                                      preferred_element_type=jnp.float32)
    # TODO(synk): for long sequences, tile attention flash-style over (query, kv) blocks with
    # online softmax + VMEM accumulators instead of materializing full (S, S) scores.
    t = x + attn_acc + bo_ref[...]

    # ---------------- feed-forward sub-block ----------------
    n3 = _layernorm(t, g3_ref[...], be3_ref[...])
    h1 = jnp.dot(n3.astype(cd), w1_ref[...],
                 preferred_element_type=jnp.float32) + b1_ref[...]
    # exact GELU (nn.GELU default): 0.5 * x * (1 + erf(x / sqrt(2)))
    h1 = 0.5 * h1 * (1.0 + jax.lax.erf(h1 * jnp.float32(1.0 / math.sqrt(2.0))))
    h2 = jnp.dot(h1.astype(cd), w2_ref[...],
                 preferred_element_type=jnp.float32) + b2_ref[...]

    o_ref[...] = (t + h2).reshape(Bt, S, D)


# ----------------------------- wrapper -----------------------------

def _choose_batch_tile(B, S, target_rows=256):
    """Block enough batch elements so each grid step has >= target_rows MXU rows."""
    bt = max(1, min(B, -(-target_rows // S)))
    while B % bt:              # keep the grid exact
        bt -= 1
    return bt


def decoder_block_pallas(x, p, *, nheads, compute_dtype=jnp.bfloat16):
    B, S, D = x.shape
    H = p["w1"].shape[1]
    dk = D // nheads
    Bt = _choose_batch_tile(B, S)

    def wspec(shape):
        # Grid-invariant weights: constant index_map, so Pallas only DMAs them once across
        # the batch-block grid.  (Single-buffering them via pl.Buffered(1) is a further VMEM
        # saving for large D/H configs.)
        nd = len(shape)
        return pl.BlockSpec(shape, lambda b: (0,) * nd)

    # bf16 matmul operands (f32 accumulation in-kernel); Wo pre-split per head on the host.
    wdt = compute_dtype
    wq = p["wq"].astype(wdt)
    wk = p["wk"].astype(wdt)
    wv = p["wv"].astype(wdt)
    wo = p["wo"].reshape(nheads, dk, D).astype(wdt)
    w1 = p["w1"].astype(wdt)
    w2 = p["w2"].astype(wdt)

    # explicit VMEM budget: weights (double-buffered by the pipeliner) + activation tiles
    wbytes = (4 * D * D + 2 * D * H) * jnp.dtype(wdt).itemsize
    abytes = Bt * S * (6 * D + 2 * H) * 4 + Bt * S * S * 4
    vmem_limit = int(min(max(2 * wbytes + 4 * abytes + (8 << 20), 32 << 20), 64 << 20))

    kernel = functools.partial(_decoder_block_kernel, nheads=nheads, dk=dk,
                               compute_dtype=compute_dtype)
    return pl.pallas_call(
        kernel,
        out_shape=jax.ShapeDtypeStruct((B, S, D), jnp.float32),
        grid_spec=pltpu.PrefetchScalarGridSpec(
            num_scalar_prefetch=0,
            grid=(B // Bt,),
            in_specs=[
                pl.BlockSpec((Bt, S, D), lambda b: (b, 0, 0)),   # x
                wspec((D, D)), wspec((D, D)), wspec((D, D)),     # Qw, Kw, Vw
                wspec((nheads, dk, D)), wspec((1, D)),           # Ow (per-head), Ow bias
                wspec((1, D)), wspec((1, D)),                    # norm1 gamma/beta
                wspec((1, D)), wspec((1, D)),                    # norm3 gamma/beta
                wspec((D, H)), wspec((1, H)),                    # fc1 W, b
                wspec((H, D)), wspec((1, D)),                    # fc2 W, b
            ],
            out_specs=pl.BlockSpec((Bt, S, D), lambda b: (b, 0, 0)),
        ),
        compiler_params=pltpu.CompilerParams(
            dimension_semantics=("parallel",),
            vmem_limit_bytes=vmem_limit,
        ),
    )(x, wq, wk, wv, wo, p["bo"],
      p["g1"], p["be1"], p["g3"], p["be3"],
      w1, p["b1"], w2, p["b2"])


def transformer_decoder_pallas(tgt, layer_params, *, nheads):
    # TODO(synk): cross-pallas_call prefetch of the next layer's weights would hide HBM
    # weight-load latency between the back-to-back per-layer calls.
    x = tgt
    for p in layer_params:
        x = decoder_block_pallas(x, p, nheads=nheads)
    return x  # (x, kv_cache_list=None) semantics with use_cache=False


# ----------------------------- pure JAX reference (for verification) -----------------------------

def _ref_block(x, p, nheads):
    B, S, D = x.shape
    dk = D // nheads
    scale = 1.0 / math.sqrt(dk)

    n1 = _layernorm(x, p["g1"][0], p["be1"][0])
    q = n1 @ p["wq"]
    k = n1 @ p["wk"]
    v = n1 @ p["wv"]
    q = q.reshape(B, S, nheads, dk)
    k = k.reshape(B, S, nheads, dk)
    v = v.reshape(B, S, nheads, dk)
    s = jnp.einsum("nqhd,nkhd->nhqk", q, k) * scale
    causal = jnp.tril(jnp.ones((S, S), dtype=bool))[None, None]
    s = jnp.where(causal, s, -1e10)
    a = jax.nn.softmax(s, axis=-1)
    o = jnp.einsum("nhql,nlhd->nqhd", a, v).reshape(B, S, D)
    o = o @ p["wo"] + p["bo"][0]
    t = x + o

    n3 = _layernorm(t, p["g3"][0], p["be3"][0])
    h1 = n3 @ p["w1"] + p["b1"][0]
    h1 = 0.5 * h1 * (1.0 + jax.lax.erf(h1 / jnp.sqrt(2.0)))
    h2 = h1 @ p["w2"] + p["b2"][0]
    return t + h2


def transformer_decoder_ref(tgt, layer_params, *, nheads):
    x = tgt
    for p in layer_params:
        x = _ref_block(x, p, nheads)
    return x


# ----------------------------- parameter init & driver -----------------------------

def init_params(key, depth, d_model, hidden):
    layers = []
    for _ in range(depth):
        keys = jax.random.split(key, 8)
        key = keys[0]
        p = {
            "wq": jax.random.normal(keys[1], (d_model, d_model), jnp.float32) * 0.02,
            "wk": jax.random.normal(keys[2], (d_model, d_model), jnp.float32) * 0.02,
            "wv": jax.random.normal(keys[3], (d_model, d_model), jnp.float32) * 0.02,
            "wo": jax.random.normal(keys[4], (d_model, d_model), jnp.float32) * 0.02,
            "bo": jnp.zeros((1, d_model), jnp.float32),
            "g1": jnp.ones((1, d_model), jnp.float32),
            "be1": jnp.zeros((1, d_model), jnp.float32),
            "g3": jnp.ones((1, d_model), jnp.float32),
            "be3": jnp.zeros((1, d_model), jnp.float32),
            "w1": jax.random.normal(keys[5], (d_model, hidden), jnp.float32) * 0.02,
            "b1": jax.random.normal(keys[6], (1, hidden), jnp.float32) * 0.02,
            "w2": jax.random.normal(keys[7], (hidden, d_model), jnp.float32) * 0.02,
            "b2": jnp.zeros((1, d_model), jnp.float32),
        }
        layers.append(p)
    return layers


if __name__ == "__main__":
    # small config consistent with TransformerDecoder(d_model=32, depth=2, nheads=4,
    # mlp_hidden_dim=64, qkv_bias=False, is_cross_attn=False, is_causal=True)
    B, S, D, NH, HID, DEPTH = 2, 8, 32, 4, 64, 2

    key = jax.random.PRNGKey(0)
    k_x, k_p = jax.random.split(key)
    tgt = jax.random.normal(k_x, (B, S, D), jnp.float32)
    params = init_params(k_p, DEPTH, D, HID)

    out = transformer_decoder_pallas(tgt, params, nheads=NH)
    out = jax.block_until_ready(out)

    ref = transformer_decoder_ref(tgt, params, nheads=NH)
    np.testing.assert_allclose(np.asarray(out), np.asarray(ref), rtol=1e-2, atol=1e-2)

    print("KERNEL_OK")
</pallas_src>

<mosaic_0001>
module attributes {stable_mosaic.version = 11 : i64} {
  func.func @_decoder_block_kernel(%arg0: i32, %arg1: memref<2x8x32xf32, #tpu.memory_space<vmem>>, %arg2: memref<32x32xbf16, #tpu.memory_space<vmem>>, %arg3: memref<32x32xbf16, #tpu.memory_space<vmem>>, %arg4: memref<32x32xbf16, #tpu.memory_space<vmem>>, %arg5: memref<4x8x32xbf16, #tpu.memory_space<vmem>>, %arg6: memref<1x32xf32, #tpu.memory_space<vmem>>, %arg7: memref<1x32xf32, #tpu.memory_space<vmem>>, %arg8: memref<1x32xf32, #tpu.memory_space<vmem>>, %arg9: memref<1x32xf32, #tpu.memory_space<vmem>>, %arg10: memref<1x32xf32, #tpu.memory_space<vmem>>, %arg11: memref<32x64xbf16, #tpu.memory_space<vmem>>, %arg12: memref<1x64xf32, #tpu.memory_space<vmem>>, %arg13: memref<64x32xbf16, #tpu.memory_space<vmem>>, %arg14: memref<1x32xf32, #tpu.memory_space<vmem>>, %arg15: memref<2x8x32xf32, #tpu.memory_space<vmem>>) attributes {dimension_semantics = [#tpu.dimension_semantics<parallel>], iteration_bounds = array<i64: 1>, scalar_prefetch = 0 : i64, scratch_operands = 0 : i64, tpu.core_type = #tpu.core_type<tc>, window_params = [{transform_indices = @transform_0, window_bounds = array<i64: 2, 8, 32>}, {pipeline_mode = #tpu.pipeline_mode<synchronous>, transform_indices = @transform_1, window_bounds = array<i64: 32, 32>}, {pipeline_mode = #tpu.pipeline_mode<synchronous>, transform_indices = @transform_2, window_bounds = array<i64: 32, 32>}, {pipeline_mode = #tpu.pipeline_mode<synchronous>, transform_indices = @transform_3, window_bounds = array<i64: 32, 32>}, {pipeline_mode = #tpu.pipeline_mode<synchronous>, transform_indices = @transform_4, window_bounds = array<i64: 4, 8, 32>}, {pipeline_mode = #tpu.pipeline_mode<synchronous>, transform_indices = @transform_5, window_bounds = array<i64: 1, 32>}, {pipeline_mode = #tpu.pipeline_mode<synchronous>, transform_indices = @transform_6, window_bounds = array<i64: 1, 32>}, {pipeline_mode = #tpu.pipeline_mode<synchronous>, transform_indices = @transform_7, window_bounds = array<i64: 1, 32>}, {pipeline_mode = #tpu.pipeline_mode<synchronous>, transform_indices = @transform_8, window_bounds = array<i64: 1, 32>}, {pipeline_mode = #tpu.pipeline_mode<synchronous>, transform_indices = @transform_9, window_bounds = array<i64: 1, 32>}, {pipeline_mode = #tpu.pipeline_mode<synchronous>, transform_indices = @transform_10, window_bounds = array<i64: 32, 64>}, {pipeline_mode = #tpu.pipeline_mode<synchronous>, transform_indices = @transform_11, window_bounds = array<i64: 1, 64>}, {pipeline_mode = #tpu.pipeline_mode<synchronous>, transform_indices = @transform_12, window_bounds = array<i64: 64, 32>}, {pipeline_mode = #tpu.pipeline_mode<synchronous>, transform_indices = @transform_13, window_bounds = array<i64: 1, 32>}, {transform_indices = @transform_14, window_bounds = array<i64: 2, 8, 32>}]} {
    %c0 = arith.constant 0 : index
    %c0_0 = arith.constant 0 : index
    %c0_1 = arith.constant 0 : index
    %0 = vector.load %arg1[%c0, %c0_0, %c0_1] : memref<2x8x32xf32, #tpu.memory_space<vmem>>, vector<2x8x32xf32>
    %1 = vector.shape_cast %0 : vector<2x8x32xf32> to vector<16x32xf32>
    %c0_2 = arith.constant 0 : index
    %c0_3 = arith.constant 0 : index
    %2 = vector.load %arg7[%c0_2, %c0_3] : memref<1x32xf32, #tpu.memory_space<vmem>>, vector<1x32xf32>
    %c0_4 = arith.constant 0 : index
    %c0_5 = arith.constant 0 : index
    %3 = vector.load %arg8[%c0_4, %c0_5] : memref<1x32xf32, #tpu.memory_space<vmem>>, vector<1x32xf32>
    %cst = arith.constant dense<0.000000e+00> : vector<16xf32>
    %4 = vector.multi_reduction <add>, %1, %cst [1] : vector<16x32xf32> to vector<16xf32>
    %5 = vector.shape_cast %4 : vector<16xf32> to vector<16x1xf32>
    %cst_6 = arith.constant 3.200000e+01 : f32
    %6 = vector.broadcast %cst_6 : f32 to vector<16x1xf32>
    %7 = arith.divf %5, %6 : vector<16x1xf32>
    %8 = vector.broadcast %7 : vector<16x1xf32> to vector<16x32xf32>
    %9 = arith.subf %1, %8 : vector<16x32xf32>
    %10 = arith.mulf %9, %9 : vector<16x32xf32>
    %cst_7 = arith.constant dense<0.000000e+00> : vector<16xf32>
    %11 = vector.multi_reduction <add>, %10, %cst_7 [1] : vector<16x32xf32> to vector<16xf32>
    %12 = vector.shape_cast %11 : vector<16xf32> to vector<16x1xf32>
    %cst_8 = arith.constant 3.200000e+01 : f32
    %13 = vector.broadcast %cst_8 : f32 to vector<16x1xf32>
    %14 = arith.divf %12, %13 : vector<16x1xf32>
    %15 = vector.broadcast %7 : vector<16x1xf32> to vector<16x32xf32>
    %16 = arith.subf %1, %15 : vector<16x32xf32>
    %cst_9 = arith.constant 9.99999974E-6 : f32
    %17 = vector.broadcast %cst_9 : f32 to vector<16x1xf32>
    %18 = arith.addf %14, %17 : vector<16x1xf32>
    %19 = math.rsqrt %18 : vector<16x1xf32>
    %20 = vector.broadcast %19 : vector<16x1xf32> to vector<16x32xf32>
    %21 = arith.mulf %16, %20 : vector<16x32xf32>
    %22 = vector.broadcast %2 : vector<1x32xf32> to vector<16x32xf32>
    %23 = arith.mulf %21, %22 : vector<16x32xf32>
    %24 = vector.broadcast %3 : vector<1x32xf32> to vector<16x32xf32>
    %25 = arith.addf %23, %24 : vector<16x32xf32>
    %26 = arith.truncf %25 : vector<16x32xf32> to vector<16x32xbf16>
    %c0_10 = arith.constant 0 : index
    %c0_11 = arith.constant 0 : index
    %27 = vector.load %arg2[%c0_10, %c0_11] : memref<32x32xbf16, #tpu.memory_space<vmem>>, vector<32x32xbf16>
    %cst_12 = arith.constant dense<0.000000e+00> : vector<16x32xf32>
    %28 = tpu.matmul %26, %27, %cst_12 {dimension_numbers = #tpu.dot_dimension_numbers<[1], [0], [0], [1], [0, 0, 1, 1], [], []>} : vector<16x32xbf16>, vector<32x32xbf16>, vector<16x32xf32> -> vector<16x32xf32>
    %c0_13 = arith.constant 0 : index
    %c0_14 = arith.constant 0 : index
    %29 = vector.load %arg3[%c0_13, %c0_14] : memref<32x32xbf16, #tpu.memory_space<vmem>>, vector<32x32xbf16>
    %cst_15 = arith.constant dense<0.000000e+00> : vector<16x32xf32>
    %30 = tpu.matmul %26, %29, %cst_15 {dimension_numbers = #tpu.dot_dimension_numbers<[1], [0], [0], [1], [0, 0, 1, 1], [], []>} : vector<16x32xbf16>, vector<32x32xbf16>, vector<16x32xf32> -> vector<16x32xf32>
    %c0_16 = arith.constant 0 : index
    %c0_17 = arith.constant 0 : index
    %31 = vector.load %arg4[%c0_16, %c0_17] : memref<32x32xbf16, #tpu.memory_space<vmem>>, vector<32x32xbf16>
    %cst_18 = arith.constant dense<0.000000e+00> : vector<16x32xf32>
    %32 = tpu.matmul %26, %31, %cst_18 {dimension_numbers = #tpu.dot_dimension_numbers<[1], [0], [0], [1], [0, 0, 1, 1], [], []>} : vector<16x32xbf16>, vector<32x32xbf16>, vector<16x32xf32> -> vector<16x32xf32>
    %cst_19 = arith.constant 0.353553385 : f32
    %33 = vector.broadcast %cst_19 : f32 to vector<16x32xf32>
    %34 = arith.mulf %28, %33 : vector<16x32xf32>
    %35 = arith.truncf %34 : vector<16x32xf32> to vector<16x32xbf16>
    %36 = arith.truncf %30 : vector<16x32xf32> to vector<16x32xbf16>
    %37 = arith.truncf %32 : vector<16x32xf32> to vector<16x32xbf16>
    %38 = tpu.iota {dimensions = array<i32: 0>} : vector<8x8xi32>
    %39 = tpu.iota {dimensions = array<i32: 1>} : vector<8x8xi32>
    %40 = arith.cmpi sge, %38, %39 : vector<8x8xi32>
    %cst_20 = arith.constant 0.000000e+00 : f32
    %cst_21 = arith.constant -1.000000e+10 : f32
    %41 = vector.broadcast %cst_20 : f32 to vector<8x8xf32>
    %42 = vector.broadcast %cst_21 : f32 to vector<8x8xf32>
    %43 = arith.select %40, %41, %42 : vector<8x8xi1>, vector<8x8xf32>
    %44 = vector.shape_cast %43 : vector<8x8xf32> to vector<1x8x8xf32>
    %45 = vector.shape_cast %44 : vector<1x8x8xf32> to vector<1x8x8xf32>
    %46 = vector.broadcast %45 : vector<1x8x8xf32> to vector<2x8x8xf32>
    %cst_22 = arith.constant 0.000000e+00 : f32
    %47 = vector.broadcast %cst_22 : f32 to vector<16x32xf32>
    %48 = vector.extract_strided_slice %35 {offsets = [0, 0], sizes = [16, 8], strides = [1, 1]} : vector<16x32xbf16> to vector<16x8xbf16>
    %49 = vector.shape_cast %48 : vector<16x8xbf16> to vector<2x8x8xbf16>
    %50 = vector.extract_strided_slice %36 {offsets = [0, 0], sizes = [16, 8], strides = [1, 1]} : vector<16x32xbf16> to vector<16x8xbf16>
    %51 = vector.shape_cast %50 : vector<16x8xbf16> to vector<2x8x8xbf16>
    %52 = vector.extract_strided_slice %37 {offsets = [0, 0], sizes = [16, 8], strides = [1, 1]} : vector<16x32xbf16> to vector<16x8xbf16>
    %53 = vector.shape_cast %52 : vector<16x8xbf16> to vector<2x8x8xbf16>
    "tpu.trace_start"() <{level = 10 : i32, message = "bqd,bkd->bqk"}> : () -> ()
    %cst_23 = arith.constant dense<0.000000e+00> : vector<2x8x8xf32>
    %54 = tpu.matmul %49, %51, %cst_23 {dimension_numbers = #tpu.dot_dimension_numbers<[2], [2], [1], [1], [0, 0, 0, 1, 1, 1], [0], [0]>} : vector<2x8x8xbf16>, vector<2x8x8xbf16>, vector<2x8x8xf32> -> vector<2x8x8xf32>
    "tpu.trace_stop"() : () -> ()
    %55 = arith.addf %54, %46 : vector<2x8x8xf32>
    %cst_24 = arith.constant dense<0xFF800000> : vector<2x8xf32>
    %56 = vector.multi_reduction <maximumf>, %55, %cst_24 [2] : vector<2x8x8xf32> to vector<2x8xf32>
    %57 = vector.shape_cast %56 : vector<2x8xf32> to vector<2x8x1xf32>
    %58 = vector.broadcast %57 : vector<2x8x1xf32> to vector<2x8x8xf32>
    %59 = arith.subf %55, %58 : vector<2x8x8xf32>
    %60 = math.exp %59 : vector<2x8x8xf32>
    %cst_25 = arith.constant dense<0.000000e+00> : vector<2x8xf32>
    %61 = vector.multi_reduction <add>, %60, %cst_25 [2] : vector<2x8x8xf32> to vector<2x8xf32>
    %62 = vector.shape_cast %61 : vector<2x8xf32> to vector<2x8x1xf32>
    %63 = tpu.reciprocal %62 {approx = true} : vector<2x8x1xf32> -> vector<2x8x1xf32>
    %64 = vector.broadcast %63 : vector<2x8x1xf32> to vector<2x8x8xf32>
    %65 = arith.mulf %60, %64 : vector<2x8x8xf32>
    %66 = arith.truncf %65 : vector<2x8x8xf32> to vector<2x8x8xbf16>
    "tpu.trace_start"() <{level = 10 : i32, message = "bqk,bkd->bqd"}> : () -> ()
    %cst_26 = arith.constant dense<0.000000e+00> : vector<2x8x8xf32>
    %67 = tpu.matmul %66, %53, %cst_26 {dimension_numbers = #tpu.dot_dimension_numbers<[2], [1], [1], [2], [0, 0, 0, 1, 1, 2], [0], [0]>} : vector<2x8x8xbf16>, vector<2x8x8xbf16>, vector<2x8x8xf32> -> vector<2x8x8xf32>
    "tpu.trace_stop"() : () -> ()
    %68 = vector.shape_cast %67 : vector<2x8x8xf32> to vector<16x8xf32>
    %69 = arith.truncf %68 : vector<16x8xf32> to vector<16x8xbf16>
    %c0_27 = arith.constant 0 : index
    %c0_28 = arith.constant 0 : index
    %c0_29 = arith.constant 0 : index
    %70 = vector.load %arg5[%c0_27, %c0_28, %c0_29] : memref<4x8x32xbf16, #tpu.memory_space<vmem>>, vector<1x8x32xbf16>
    %71 = vector.shape_cast %70 : vector<1x8x32xbf16> to vector<8x32xbf16>
    %cst_30 = arith.constant dense<0.000000e+00> : vector<16x32xf32>
    %72 = tpu.matmul %69, %71, %cst_30 {dimension_numbers = #tpu.dot_dimension_numbers<[1], [0], [0], [1], [0, 0, 1, 1], [], []>} : vector<16x8xbf16>, vector<8x32xbf16>, vector<16x32xf32> -> vector<16x32xf32>
    %73 = arith.addf %47, %72 : vector<16x32xf32>
    %74 = vector.extract_strided_slice %35 {offsets = [0, 8], sizes = [16, 8], strides = [1, 1]} : vector<16x32xbf16> to vector<16x8xbf16>
    %75 = vector.shape_cast %74 : vector<16x8xbf16> to vector<2x8x8xbf16>
    %76 = vector.extract_strided_slice %36 {offsets = [0, 8], sizes = [16, 8], strides = [1, 1]} : vector<16x32xbf16> to vector<16x8xbf16>
    %77 = vector.shape_cast %76 : vector<16x8xbf16> to vector<2x8x8xbf16>
    %78 = vector.extract_strided_slice %37 {offsets = [0, 8], sizes = [16, 8], strides = [1, 1]} : vector<16x32xbf16> to vector<16x8xbf16>
    %79 = vector.shape_cast %78 : vector<16x8xbf16> to vector<2x8x8xbf16>
    "tpu.trace_start"() <{level = 10 : i32, message = "bqd,bkd->bqk"}> : () -> ()
    %cst_31 = arith.constant dense<0.000000e+00> : vector<2x8x8xf32>
    %80 = tpu.matmul %75, %77, %cst_31 {dimension_numbers = #tpu.dot_dimension_numbers<[2], [2], [1], [1], [0, 0, 0, 1, 1, 1], [0], [0]>} : vector<2x8x8xbf16>, vector<2x8x8xbf16>, vector<2x8x8xf32> -> vector<2x8x8xf32>
    "tpu.trace_stop"() : () -> ()
    %81 = arith.addf %80, %46 : vector<2x8x8xf32>
    %cst_32 = arith.constant dense<0xFF800000> : vector<2x8xf32>
    %82 = vector.multi_reduction <maximumf>, %81, %cst_32 [2] : vector<2x8x8xf32> to vector<2x8xf32>
    %83 = vector.shape_cast %82 : vector<2x8xf32> to vector<2x8x1xf32>
    %84 = vector.broadcast %83 : vector<2x8x1xf32> to vector<2x8x8xf32>
    %85 = arith.subf %81, %84 : vector<2x8x8xf32>
    %86 = math.exp %85 : vector<2x8x8xf32>
    %cst_33 = arith.constant dense<0.000000e+00> : vector<2x8xf32>
    %87 = vector.multi_reduction <add>, %86, %cst_33 [2] : vector<2x8x8xf32> to vector<2x8xf32>
    %88 = vector.shape_cast %87 : vector<2x8xf32> to vector<2x8x1xf32>
    %89 = tpu.reciprocal %88 {approx = true} : vector<2x8x1xf32> -> vector<2x8x1xf32>
    %90 = vector.broadcast %89 : vector<2x8x1xf32> to vector<2x8x8xf32>
    %91 = arith.mulf %86, %90 : vector<2x8x8xf32>
    %92 = arith.truncf %91 : vector<2x8x8xf32> to vector<2x8x8xbf16>
    "tpu.trace_start"() <{level = 10 : i32, message = "bqk,bkd->bqd"}> : () -> ()
    %cst_34 = arith.constant dense<0.000000e+00> : vector<2x8x8xf32>
    %93 = tpu.matmul %92, %79, %cst_34 {dimension_numbers = #tpu.dot_dimension_numbers<[2], [1], [1], [2], [0, 0, 0, 1, 1, 2], [0], [0]>} : vector<2x8x8xbf16>, vector<2x8x8xbf16>, vector<2x8x8xf32> -> vector<2x8x8xf32>
    "tpu.trace_stop"() : () -> ()
    %94 = vector.shape_cast %93 : vector<2x8x8xf32> to vector<16x8xf32>
    %95 = arith.truncf %94 : vector<16x8xf32> to vector<16x8xbf16>
    %c1 = arith.constant 1 : index
    %c0_35 = arith.constant 0 : index
    %c0_36 = arith.constant 0 : index
    %96 = vector.load %arg5[%c1, %c0_35, %c0_36] : memref<4x8x32xbf16, #tpu.memory_space<vmem>>, vector<1x8x32xbf16>
    %97 = vector.shape_cast %96 : vector<1x8x32xbf16> to vector<8x32xbf16>
    %cst_37 = arith.constant dense<0.000000e+00> : vector<16x32xf32>
    %98 = tpu.matmul %95, %97, %cst_37 {dimension_numbers = #tpu.dot_dimension_numbers<[1], [0], [0], [1], [0, 0, 1, 1], [], []>} : vector<16x8xbf16>, vector<8x32xbf16>, vector<16x32xf32> -> vector<16x32xf32>
    %99 = arith.addf %73, %98 : vector<16x32xf32>
    %100 = vector.extract_strided_slice %35 {offsets = [0, 16], sizes = [16, 8], strides = [1, 1]} : vector<16x32xbf16> to vector<16x8xbf16>
    %101 = vector.shape_cast %100 : vector<16x8xbf16> to vector<2x8x8xbf16>
    %102 = vector.extract_strided_slice %36 {offsets = [0, 16], sizes = [16, 8], strides = [1, 1]} : vector<16x32xbf16> to vector<16x8xbf16>
    %103 = vector.shape_cast %102 : vector<16x8xbf16> to vector<2x8x8xbf16>
    %104 = vector.extract_strided_slice %37 {offsets = [0, 16], sizes = [16, 8], strides = [1, 1]} : vector<16x32xbf16> to vector<16x8xbf16>
    %105 = vector.shape_cast %104 : vector<16x8xbf16> to vector<2x8x8xbf16>
    "tpu.trace_start"() <{level = 10 : i32, message = "bqd,bkd->bqk"}> : () -> ()
    %cst_38 = arith.constant dense<0.000000e+00> : vector<2x8x8xf32>
    %106 = tpu.matmul %101, %103, %cst_38 {dimension_numbers = #tpu.dot_dimension_numbers<[2], [2], [1], [1], [0, 0, 0, 1, 1, 1], [0], [0]>} : vector<2x8x8xbf16>, vector<2x8x8xbf16>, vector<2x8x8xf32> -> vector<2x8x8xf32>
    "tpu.trace_stop"() : () -> ()
    %107 = arith.addf %106, %46 : vector<2x8x8xf32>
    %cst_39 = arith.constant dense<0xFF800000> : vector<2x8xf32>
    %108 = vector.multi_reduction <maximumf>, %107, %cst_39 [2] : vector<2x8x8xf32> to vector<2x8xf32>
    %109 = vector.shape_cast %108 : vector<2x8xf32> to vector<2x8x1xf32>
    %110 = vector.broadcast %109 : vector<2x8x1xf32> to vector<2x8x8xf32>
    %111 = arith.subf %107, %110 : vector<2x8x8xf32>
    %112 = math.exp %111 : vector<2x8x8xf32>
    %cst_40 = arith.constant dense<0.000000e+00> : vector<2x8xf32>
    %113 = vector.multi_reduction <add>, %112, %cst_40 [2] : vector<2x8x8xf32> to vector<2x8xf32>
    %114 = vector.shape_cast %113 : vector<2x8xf32> to vector<2x8x1xf32>
    %115 = tpu.reciprocal %114 {approx = true} : vector<2x8x1xf32> -> vector<2x8x1xf32>
    %116 = vector.broadcast %115 : vector<2x8x1xf32> to vector<2x8x8xf32>
    %117 = arith.mulf %112, %116 : vector<2x8x8xf32>
    %118 = arith.truncf %117 : vector<2x8x8xf32> to vector<2x8x8xbf16>
    "tpu.trace_start"() <{level = 10 : i32, message = "bqk,bkd->bqd"}> : () -> ()
    %cst_41 = arith.constant dense<0.000000e+00> : vector<2x8x8xf32>
    %119 = tpu.matmul %118, %105, %cst_41 {dimension_numbers = #tpu.dot_dimension_numbers<[2], [1], [1], [2], [0, 0, 0, 1, 1, 2], [0], [0]>} : vector<2x8x8xbf16>, vector<2x8x8xbf16>, vector<2x8x8xf32> -> vector<2x8x8xf32>
    "tpu.trace_stop"() : () -> ()
    %120 = vector.shape_cast %119 : vector<2x8x8xf32> to vector<16x8xf32>
    %121 = arith.truncf %120 : vector<16x8xf32> to vector<16x8xbf16>
    %c2 = arith.constant 2 : index
    %c0_42 = arith.constant 0 : index
    %c0_43 = arith.constant 0 : index
    %122 = vector.load %arg5[%c2, %c0_42, %c0_43] : memref<4x8x32xbf16, #tpu.memory_space<vmem>>, vector<1x8x32xbf16>
    %123 = vector.shape_cast %122 : vector<1x8x32xbf16> to vector<8x32xbf16>
    %cst_44 = arith.constant dense<0.000000e+00> : vector<16x32xf32>
    %124 = tpu.matmul %121, %123, %cst_44 {dimension_numbers = #tpu.dot_dimension_numbers<[1], [0], [0], [1], [0, 0, 1, 1], [], []>} : vector<16x8xbf16>, vector<8x32xbf16>, vector<16x32xf32> -> vector<16x32xf32>
    %125 = arith.addf %99, %124 : vector<16x32xf32>
    %126 = vector.extract_strided_slice %35 {offsets = [0, 24], sizes = [16, 8], strides = [1, 1]} : vector<16x32xbf16> to vector<16x8xbf16>
    %127 = vector.shape_cast %126 : vector<16x8xbf16> to vector<2x8x8xbf16>
    %128 = vector.extract_strided_slice %36 {offsets = [0, 24], sizes = [16, 8], strides = [1, 1]} : vector<16x32xbf16> to vector<16x8xbf16>
    %129 = vector.shape_cast %128 : vector<16x8xbf16> to vector<2x8x8xbf16>
    %130 = vector.extract_strided_slice %37 {offsets = [0, 24], sizes = [16, 8], strides = [1, 1]} : vector<16x32xbf16> to vector<16x8xbf16>
    %131 = vector.shape_cast %130 : vector<16x8xbf16> to vector<2x8x8xbf16>
    "tpu.trace_start"() <{level = 10 : i32, message = "bqd,bkd->bqk"}> : () -> ()
    %cst_45 = arith.constant dense<0.000000e+00> : vector<2x8x8xf32>
    %132 = tpu.matmul %127, %129, %cst_45 {dimension_numbers = #tpu.dot_dimension_numbers<[2], [2], [1], [1], [0, 0, 0, 1, 1, 1], [0], [0]>} : vector<2x8x8xbf16>, vector<2x8x8xbf16>, vector<2x8x8xf32> -> vector<2x8x8xf32>
    "tpu.trace_stop"() : () -> ()
    %133 = arith.addf %132, %46 : vector<2x8x8xf32>
    %cst_46 = arith.constant dense<0xFF800000> : vector<2x8xf32>
    %134 = vector.multi_reduction <maximumf>, %133, %cst_46 [2] : vector<2x8x8xf32> to vector<2x8xf32>
    %135 = vector.shape_cast %134 : vector<2x8xf32> to vector<2x8x1xf32>
    %136 = vector.broadcast %135 : vector<2x8x1xf32> to vector<2x8x8xf32>
    %137 = arith.subf %133, %136 : vector<2x8x8xf32>
    %138 = math.exp %137 : vector<2x8x8xf32>
    %cst_47 = arith.constant dense<0.000000e+00> : vector<2x8xf32>
    %139 = vector.multi_reduction <add>, %138, %cst_47 [2] : vector<2x8x8xf32> to vector<2x8xf32>
    %140 = vector.shape_cast %139 : vector<2x8xf32> to vector<2x8x1xf32>
    %141 = tpu.reciprocal %140 {approx = true} : vector<2x8x1xf32> -> vector<2x8x1xf32>
    %142 = vector.broadcast %141 : vector<2x8x1xf32> to vector<2x8x8xf32>
    %143 = arith.mulf %138, %142 : vector<2x8x8xf32>
    %144 = arith.truncf %143 : vector<2x8x8xf32> to vector<2x8x8xbf16>
    "tpu.trace_start"() <{level = 10 : i32, message = "bqk,bkd->bqd"}> : () -> ()
    %cst_48 = arith.constant dense<0.000000e+00> : vector<2x8x8xf32>
    %145 = tpu.matmul %144, %131, %cst_48 {dimension_numbers = #tpu.dot_dimension_numbers<[2], [1], [1], [2], [0, 0, 0, 1, 1, 2], [0], [0]>} : vector<2x8x8xbf16>, vector<2x8x8xbf16>, vector<2x8x8xf32> -> vector<2x8x8xf32>
    "tpu.trace_stop"() : () -> ()
    %146 = vector.shape_cast %145 : vector<2x8x8xf32> to vector<16x8xf32>
    %147 = arith.truncf %146 : vector<16x8xf32> to vector<16x8xbf16>
    %c3 = arith.constant 3 : index
    %c0_49 = arith.constant 0 : index
    %c0_50 = arith.constant 0 : index
    %148 = vector.load %arg5[%c3, %c0_49, %c0_50] : memref<4x8x32xbf16, #tpu.memory_space<vmem>>, vector<1x8x32xbf16>
    %149 = vector.shape_cast %148 : vector<1x8x32xbf16> to vector<8x32xbf16>
    %cst_51 = arith.constant dense<0.000000e+00> : vector<16x32xf32>
    %150 = tpu.matmul %147, %149, %cst_51 {dimension_numbers = #tpu.dot_dimension_numbers<[1], [0], [0], [1], [0, 0, 1, 1], [], []>} : vector<16x8xbf16>, vector<8x32xbf16>, vector<16x32xf32> -> vector<16x32xf32>
    %151 = arith.addf %125, %150 : vector<16x32xf32>
    %152 = arith.addf %1, %151 : vector<16x32xf32>
    %c0_52 = arith.constant 0 : index
    %c0_53 = arith.constant 0 : index
    %153 = vector.load %arg6[%c0_52, %c0_53] : memref<1x32xf32, #tpu.memory_space<vmem>>, vector<1x32xf32>
    %154 = vector.broadcast %153 : vector<1x32xf32> to vector<16x32xf32>
    %155 = arith.addf %152, %154 : vector<16x32xf32>
    %c0_54 = arith.constant 0 : index
    %c0_55 = arith.constant 0 : index
    %156 = vector.load %arg9[%c0_54, %c0_55] : memref<1x32xf32, #tpu.memory_space<vmem>>, vector<1x32xf32>
    %c0_56 = arith.constant 0 : index
    %c0_57 = arith.constant 0 : index
    %157 = vector.load %arg10[%c0_56, %c0_57] : memref<1x32xf32, #tpu.memory_space<vmem>>, vector<1x32xf32>
    %cst_58 = arith.constant dense<0.000000e+00> : vector<16xf32>
    %158 = vector.multi_reduction <add>, %155, %cst_58 [1] : vector<16x32xf32> to vector<16xf32>
    %159 = vector.shape_cast %158 : vector<16xf32> to vector<16x1xf32>
    %cst_59 = arith.constant 3.200000e+01 : f32
    %160 = vector.broadcast %cst_59 : f32 to vector<16x1xf32>
    %161 = arith.divf %159, %160 : vector<16x1xf32>
    %162 = vector.broadcast %161 : vector<16x1xf32> to vector<16x32xf32>
    %163 = arith.subf %155, %162 : vector<16x32xf32>
    %164 = arith.mulf %163, %163 : vector<16x32xf32>
    %cst_60 = arith.constant dense<0.000000e+00> : vector<16xf32>
    %165 = vector.multi_reduction <add>, %164, %cst_60 [1] : vector<16x32xf32> to vector<16xf32>
    %166 = vector.shape_cast %165 : vector<16xf32> to vector<16x1xf32>
    %cst_61 = arith.constant 3.200000e+01 : f32
    %167 = vector.broadcast %cst_61 : f32 to vector<16x1xf32>
    %168 = arith.divf %166, %167 : vector<16x1xf32>
    %169 = vector.broadcast %161 : vector<16x1xf32> to vector<16x32xf32>
    %170 = arith.subf %155, %169 : vector<16x32xf32>
    %cst_62 = arith.constant 9.99999974E-6 : f32
    %171 = vector.broadcast %cst_62 : f32 to vector<16x1xf32>
    %172 = arith.addf %168, %171 : vector<16x1xf32>
    %173 = math.rsqrt %172 : vector<16x1xf32>
    %174 = vector.broadcast %173 : vector<16x1xf32> to vector<16x32xf32>
    %175 = arith.mulf %170, %174 : vector<16x32xf32>
    %176 = vector.broadcast %156 : vector<1x32xf32> to vector<16x32xf32>
    %177 = arith.mulf %175, %176 : vector<16x32xf32>
    %178 = vector.broadcast %157 : vector<1x32xf32> to vector<16x32xf32>
    %179 = arith.addf %177, %178 : vector<16x32xf32>
    %180 = arith.truncf %179 : vector<16x32xf32> to vector<16x32xbf16>
    %c0_63 = arith.constant 0 : index
    %c0_64 = arith.constant 0 : index
    %181 = vector.load %arg11[%c0_63, %c0_64] : memref<32x64xbf16, #tpu.memory_space<vmem>>, vector<32x64xbf16>
    %cst_65 = arith.constant dense<0.000000e+00> : vector<16x64xf32>
    %182 = tpu.matmul %180, %181, %cst_65 {dimension_numbers = #tpu.dot_dimension_numbers<[1], [0], [0], [1], [0, 0, 1, 1], [], []>} : vector<16x32xbf16>, vector<32x64xbf16>, vector<16x64xf32> -> vector<16x64xf32>
    %c0_66 = arith.constant 0 : index
    %c0_67 = arith.constant 0 : index
    %183 = vector.load %arg12[%c0_66, %c0_67] : memref<1x64xf32, #tpu.memory_space<vmem>>, vector<1x64xf32>
    %184 = vector.broadcast %183 : vector<1x64xf32> to vector<16x64xf32>
    %185 = arith.addf %182, %184 : vector<16x64xf32>
    %cst_68 = arith.constant 5.000000e-01 : f32
    %186 = vector.broadcast %cst_68 : f32 to vector<16x64xf32>
    %187 = arith.mulf %186, %185 : vector<16x64xf32>
    %cst_69 = arith.constant 0.707106769 : f32
    %188 = vector.broadcast %cst_69 : f32 to vector<16x64xf32>
    %189 = arith.mulf %185, %188 : vector<16x64xf32>
    %190 = math.erf %189 : vector<16x64xf32>
    %cst_70 = arith.constant 1.000000e+00 : f32
    %191 = vector.broadcast %cst_70 : f32 to vector<16x64xf32>
    %192 = arith.addf %191, %190 : vector<16x64xf32>
    %193 = arith.mulf %187, %192 : vector<16x64xf32>
    %194 = arith.truncf %193 : vector<16x64xf32> to vector<16x64xbf16>
    %c0_71 = arith.constant 0 : index
    %c0_72 = arith.constant 0 : index
    %195 = vector.load %arg13[%c0_71, %c0_72] : memref<64x32xbf16, #tpu.memory_space<vmem>>, vector<64x32xbf16>
    %cst_73 = arith.constant dense<0.000000e+00> : vector<16x32xf32>
    %196 = tpu.matmul %194, %195, %cst_73 {dimension_numbers = #tpu.dot_dimension_numbers<[1], [0], [0], [1], [0, 0, 1, 1], [], []>} : vector<16x64xbf16>, vector<64x32xbf16>, vector<16x32xf32> -> vector<16x32xf32>
    %c0_74 = arith.constant 0 : index
    %c0_75 = arith.constant 0 : index
    %197 = vector.load %arg14[%c0_74, %c0_75] : memref<1x32xf32, #tpu.memory_space<vmem>>, vector<1x32xf32>
    %198 = vector.broadcast %197 : vector<1x32xf32> to vector<16x32xf32>
    %199 = arith.addf %196, %198 : vector<16x32xf32>
    %200 = arith.addf %155, %199 : vector<16x32xf32>
    %201 = vector.shape_cast %200 : vector<16x32xf32> to vector<2x8x32xf32>
    %c0_76 = arith.constant 0 : index
    %c0_77 = arith.constant 0 : index
    %c0_78 = arith.constant 0 : index
    %202 = vector.load %arg15[%c0_76, %c0_77, %c0_78] : memref<2x8x32xf32, #tpu.memory_space<vmem>>, vector<2x8x32xf32>
    tpu.vector_store %arg15[%c0_76, %c0_77, %c0_78], %201 {strides = array<i32>} : memref<2x8x32xf32, #tpu.memory_space<vmem>>, vector<2x8x32xf32>,
    return
  }
  func.func @transform_0(%arg0: i32) -> (i32, i32, i32) {
    %c0_i32 = arith.constant 0 : i32
    %c0_i32_0 = arith.constant 0 : i32
    %c0_i32_1 = arith.constant 0 : i32
    return %arg0, %c0_i32, %c0_i32_0 : i32, i32, i32
  }
  func.func @transform_1(%arg0: i32) -> (i32, i32) {
    %c0_i32 = arith.constant 0 : i32
    %c0_i32_0 = arith.constant 0 : i32
    %c0_i32_1 = arith.constant 0 : i32
    return %c0_i32, %c0_i32_0 : i32, i32
  }
  func.func @transform_2(%arg0: i32) -> (i32, i32) {
    %c0_i32 = arith.constant 0 : i32
    %c0_i32_0 = arith.constant 0 : i32
    %c0_i32_1 = arith.constant 0 : i32
    return %c0_i32, %c0_i32_0 : i32, i32
  }
  func.func @transform_3(%arg0: i32) -> (i32, i32) {
    %c0_i32 = arith.constant 0 : i32
    %c0_i32_0 = arith.constant 0 : i32
    %c0_i32_1 = arith.constant 0 : i32
    return %c0_i32, %c0_i32_0 : i32, i32
  }
  func.func @transform_4(%arg0: i32) -> (i32, i32, i32) {
    %c0_i32 = arith.constant 0 : i32
    %c0_i32_0 = arith.constant 0 : i32
    %c0_i32_1 = arith.constant 0 : i32
    %c0_i32_2 = arith.constant 0 : i32
    return %c0_i32, %c0_i32_0, %c0_i32_1 : i32, i32, i32
  }
  func.func @transform_5(%arg0: i32) -> (i32, i32) {
    %c0_i32 = arith.constant 0 : i32
    %c0_i32_0 = arith.constant 0 : i32
    %c0_i32_1 = arith.constant 0 : i32
    return %c0_i32, %c0_i32_0 : i32, i32
  }
  func.func @transform_6(%arg0: i32) -> (i32, i32) {
    %c0_i32 = arith.constant 0 : i32
    %c0_i32_0 = arith.constant 0 : i32
    %c0_i32_1 = arith.constant 0 : i32
    return %c0_i32, %c0_i32_0 : i32, i32
  }
  func.func @transform_7(%arg0: i32) -> (i32, i32) {
    %c0_i32 = arith.constant 0 : i32
    %c0_i32_0 = arith.constant 0 : i32
    %c0_i32_1 = arith.constant 0 : i32
    return %c0_i32, %c0_i32_0 : i32, i32
  }
  func.func @transform_8(%arg0: i32) -> (i32, i32) {
    %c0_i32 = arith.constant 0 : i32
    %c0_i32_0 = arith.constant 0 : i32
    %c0_i32_1 = arith.constant 0 : i32
    return %c0_i32, %c0_i32_0 : i32, i32
  }
  func.func @transform_9(%arg0: i32) -> (i32, i32) {
    %c0_i32 = arith.constant 0 : i32
    %c0_i32_0 = arith.constant 0 : i32
    %c0_i32_1 = arith.constant 0 : i32
    return %c0_i32, %c0_i32_0 : i32, i32
  }
  func.func @transform_10(%arg0: i32) -> (i32, i32) {
    %c0_i32 = arith.constant 0 : i32
    %c0_i32_0 = arith.constant 0 : i32
    %c0_i32_1 = arith.constant 0 : i32
    return %c0_i32, %c0_i32_0 : i32, i32
  }
  func.func @transform_11(%arg0: i32) -> (i32, i32) {
    %c0_i32 = arith.constant 0 : i32
    %c0_i32_0 = arith.constant 0 : i32
    %c0_i32_1 = arith.constant 0 : i32
    return %c0_i32, %c0_i32_0 : i32, i32
  }
  func.func @transform_12(%arg0: i32) -> (i32, i32) {
    %c0_i32 = arith.constant 0 : i32
    %c0_i32_0 = arith.constant 0 : i32
    %c0_i32_1 = arith.constant 0 : i32
    return %c0_i32, %c0_i32_0 : i32, i32
  }
  func.func @transform_13(%arg0: i32) -> (i32, i32) {
    %c0_i32 = arith.constant 0 : i32
    %c0_i32_0 = arith.constant 0 : i32
    %c0_i32_1 = arith.constant 0 : i32
    return %c0_i32, %c0_i32_0 : i32, i32
  }
  func.func @transform_14(%arg0: i32) -> (i32, i32, i32) {
    %c0_i32 = arith.constant 0 : i32
    %c0_i32_0 = arith.constant 0 : i32
    %c0_i32_1 = arith.constant 0 : i32
    return %arg0, %c0_i32, %c0_i32_0 : i32, i32, i32
  }
}

</mosaic_0001>

<llo_original>
// kernel: tpu_custom_call.1
$region0: #{tpu_custom_call.1}
  #allocation0 [shape = 'u32[]', space=smem, size = 0x4, offset = 0x4, fixed_abs, tag = 'smem constant byte address 0x4 - core index']
  #allocation1 [shape = 'u32[72,128]{1,0:T(1,128)}', space=vmem, size = 0x9000, scoped, tag = 'internal scratch']
  %s0 = inlined_call_operand.vmem [shape: f32[2,8,32], index: 0, kind: input, shape index: {}]
  %s1 = inlined_call_operand.vmem [shape: bf16[32,32], index: 1, kind: input, shape index: {}]
  %s2 = inlined_call_operand.vmem [shape: bf16[32,32], index: 2, kind: input, shape index: {}]
  %s3 = inlined_call_operand.hbm [shape: bf16[32,32], index: 3, kind: input, shape index: {}]
  %s4 = inlined_call_operand.hbm [shape: bf16[4,8,32], index: 4, kind: input, shape index: {}]
  %s5 = inlined_call_operand.vmem [shape: f32[1,32], index: 5, kind: input, shape index: {}]
  %s6 = inlined_call_operand.vmem [shape: f32[1,32], index: 6, kind: input, shape index: {}]
  %s7 = inlined_call_operand.vmem [shape: f32[1,32], index: 7, kind: input, shape index: {}]
  %s8 = inlined_call_operand.vmem [shape: f32[1,32], index: 8, kind: input, shape index: {}]
  %s9 = inlined_call_operand.vmem [shape: f32[1,32], index: 9, kind: input, shape index: {}]
  %s10 = inlined_call_operand.hbm [shape: bf16[32,64], index: 10, kind: input, shape index: {}]
  %s11 = inlined_call_operand.vmem [shape: f32[1,64], index: 11, kind: input, shape index: {}]
  %s12 = inlined_call_operand.vmem [shape: bf16[64,32], index: 12, kind: input, shape index: {}]
  %s13 = inlined_call_operand.vmem [shape: f32[1,32], index: 13, kind: input, shape index: {}]
  %s14 = inlined_call_operand.hbm [shape: f32[2,8,32], index: 14, kind: output, shape index: {}]
  %s15 = sld [smem:[#allocation0]]
  $region78: #{tpu_custom_call.1} parent=0
    _
  %s17 = ssub.s32 1, %s15
  %s18 = scalar_select 0, %s17, %s15
  $region1: #{tpu_custom_call.1} parent=0
    #allocation2 [shape = 'u8[8192]{0}', space=vmem, size = 0x2000, scoped, tag = 'input window, operand 3, single buffered']
    #allocation3 [shape = 's32[1]{0}', space=sflag, size = 0x4, scoped, tag = 'scoped memory for tpu_custom_call.1']
    #allocation4 [shape = 's32[1]{0}', space=sflag, size = 0x4, scoped, tag = 'scoped memory for tpu_custom_call.1']
    #allocation5 [shape = 'u8[8192]{0}', space=vmem, size = 0x2000, scoped, tag = 'input window, operand 4, single buffered']
    #allocation6 [shape = 's32[1]{0}', space=sflag, size = 0x4, scoped, tag = 'scoped memory for tpu_custom_call.1']
    #allocation7 [shape = 'u8[8192]{0}', space=vmem, size = 0x2000, scoped, tag = 'input window, operand 10, single buffered']
    #allocation8 [shape = 'u8[8192]{0}', space=vmem, size = 0x2000, scoped, tag = 'output window, operand 0, single buffered']
    %19 = vsyncpa [#allocation3], 0
    %20 = vsyncpa [#allocation6], 0
    %21 = vsyncpa [#allocation4], 0
    // Predicated region
    $region2: #{tpu_custom_call.1} parent=1 // pred_check
      _
    $region3: #{tpu_custom_call.1} parent=1 // pred_check_branch
      %23 = sbr.rel (0) target = $region5
    $region4: #{tpu_custom_call.1} parent=1 // pred_region
      _
    $region5: #{tpu_custom_call.1} parent=1 // pred_fallthru
      _
    // Predicated region
    $region6: #{tpu_custom_call.1} parent=1 // pred_check
      _
    $region7: #{tpu_custom_call.1} parent=1 // pred_check_branch
      %25 = sbr.rel (0) target = $region9
    $region8: #{tpu_custom_call.1} parent=1 // pred_region
      _
    $region9: #{tpu_custom_call.1} parent=1 // pred_fallthru
      _
    // Predicated region
    $region10: #{tpu_custom_call.1} parent=1 // pred_check
      _
    $region11: #{tpu_custom_call.1} parent=1 // pred_check_branch
      %27 = sbr.rel (0) target = $region13
    $region12: #{tpu_custom_call.1} parent=1 // pred_region
      _
    $region13: #{tpu_custom_call.1} parent=1 // pred_fallthru
      _
    // Predicated region
    $region14: #{tpu_custom_call.1} parent=1 // pred_check
      _
    $region15: #{tpu_custom_call.1} parent=1 // pred_check_branch
      %29 = sbr.rel (0) target = $region17
    $region16: #{tpu_custom_call.1} parent=1 // pred_region
      %31 = vsyncadd [#allocation3], 0
      %s32 = sshll.u32 %s3, 4
      %s33 = int_to_ptr.hbm [resolvable:$true] %s32
      %s34 = sshll.u32 [#allocation2], 4
      %s35 = int_to_ptr.vmem [resolvable:$true] %s34
      %40 = dma.hbm_to_vmem [thread:$0]  %s33, 256, %s35, [#allocation3], 64, 64, 4
    $region17: #{tpu_custom_call.1} parent=1 // pred_fallthru
      _
    // Predicated region
    $region18: #{tpu_custom_call.1} parent=1 // pred_check
      _
    $region19: #{tpu_custom_call.1} parent=1 // pred_check_branch
      %42 = sbr.rel (0) target = $region21
    $region20: #{tpu_custom_call.1} parent=1 // pred_region
      %44 = vsyncadd [#allocation6], 0
      %s45 = sshll.u32 %s4, 4
      %s46 = int_to_ptr.hbm [resolvable:$true] %s45
      %s47 = sshll.u32 [#allocation5], 4
      %s48 = int_to_ptr.vmem [resolvable:$true] %s47
      %53 = dma.hbm_to_vmem [thread:$0]  %s46, 256, %s48, [#allocation6], 64, 64, 4
    $region21: #{tpu_custom_call.1} parent=1 // pred_fallthru
      _
    // Predicated region
    $region22: #{tpu_custom_call.1} parent=1 // pred_check
      _
    $region23: #{tpu_custom_call.1} parent=1 // pred_check_branch
      %55 = sbr.rel (0) target = $region25
    $region24: #{tpu_custom_call.1} parent=1 // pred_region
      _
    $region25: #{tpu_custom_call.1} parent=1 // pred_fallthru
      _
    // Predicated region
    $region26: #{tpu_custom_call.1} parent=1 // pred_check
      _
    $region27: #{tpu_custom_call.1} parent=1 // pred_check_branch
      %57 = sbr.rel (0) target = $region29
    $region28: #{tpu_custom_call.1} parent=1 // pred_region
      _
    $region29: #{tpu_custom_call.1} parent=1 // pred_fallthru
      _
    // Predicated region
    $region30: #{tpu_custom_call.1} parent=1 // pred_check
      _
    $region31: #{tpu_custom_call.1} parent=1 // pred_check_branch
      %59 = sbr.rel (0) target = $region33
    $region32: #{tpu_custom_call.1} parent=1 // pred_region
      _
    $region33: #{tpu_custom_call.1} parent=1 // pred_fallthru
      _
    // Predicated region
    $region34: #{tpu_custom_call.1} parent=1 // pred_check
      _
    $region35: #{tpu_custom_call.1} parent=1 // pred_check_branch
      %61 = sbr.rel (0) target = $region37
    $region36: #{tpu_custom_call.1} parent=1 // pred_region
      _
    $region37: #{tpu_custom_call.1} parent=1 // pred_fallthru
      _
    // Predicated region
    $region38: #{tpu_custom_call.1} parent=1 // pred_check
      _
    $region39: #{tpu_custom_call.1} parent=1 // pred_check_branch
      %63 = sbr.rel (0) target = $region41
    $region40: #{tpu_custom_call.1} parent=1 // pred_region
      _
    $region41: #{tpu_custom_call.1} parent=1 // pred_fallthru
      _
    // Predicated region
    $region42: #{tpu_custom_call.1} parent=1 // pred_check
      _
    $region43: #{tpu_custom_call.1} parent=1 // pred_check_branch
      %65 = sbr.rel (0) target = $region45
    $region44: #{tpu_custom_call.1} parent=1 // pred_region
      %67 = vsyncadd [#allocation6], 0
      %s68 = sshll.u32 %s10, 4
      %s69 = int_to_ptr.hbm [resolvable:$true] %s68
      %s70 = sshll.u32 [#allocation7], 4
      %s71 = int_to_ptr.vmem [resolvable:$true] %s70
      %76 = dma.hbm_to_vmem [thread:$0]  %s69, 256, %s71, [#allocation6], 64, 64, 4
    $region45: #{tpu_custom_call.1} parent=1 // pred_fallthru
      _
    // Predicated region
    $region46: #{tpu_custom_call.1} parent=1 // pred_check
      _
    $region47: #{tpu_custom_call.1} parent=1 // pred_check_branch
      %78 = sbr.rel (0) target = $region49
    $region48: #{tpu_custom_call.1} parent=1 // pred_region
      _
    $region49: #{tpu_custom_call.1} parent=1 // pred_fallthru
      _
    // Predicated region
    $region50: #{tpu_custom_call.1} parent=1 // pred_check
      _
    $region51: #{tpu_custom_call.1} parent=1 // pred_check_branch
      %80 = sbr.rel (0) target = $region53
    $region52: #{tpu_custom_call.1} parent=1 // pred_region
      _
    $region53: #{tpu_custom_call.1} parent=1 // pred_fallthru
      _
    // Predicated region
    $region54: #{tpu_custom_call.1} parent=1 // pred_check
      _
    $region55: #{tpu_custom_call.1} parent=1 // pred_check_branch
      %82 = sbr.rel (0) target = $region57
    $region56: #{tpu_custom_call.1} parent=1 // pred_region
      _
    $region57: #{tpu_custom_call.1} parent=1 // pred_fallthru
      _
    // Predicated region
    $region58: #{tpu_custom_call.1} parent=1 // pred_check
      _
    $region59: #{tpu_custom_call.1} parent=1 // pred_check_branch
      %84 = sbr.rel (0) target = $region61
    $region60: #{tpu_custom_call.1} parent=1 // pred_region
      %86 = dma.done [#allocation3], 256
    $region61: #{tpu_custom_call.1} parent=1 // pred_fallthru
      _
    // Predicated region
    $region62: #{tpu_custom_call.1} parent=1 // pred_check
      _
    $region63: #{tpu_custom_call.1} parent=1 // pred_check_branch
      %88 = sbr.rel (0) target = $region65
    $region64: #{tpu_custom_call.1} parent=1 // pred_region
      %90 = dma.done [#allocation6], 256
    $region65: #{tpu_custom_call.1} parent=1 // pred_fallthru
      _
    // Predicated region
    $region66: #{tpu_custom_call.1} parent=1 // pred_check
      _
    $region67: #{tpu_custom_call.1} parent=1 // pred_check_branch
      %92 = sbr.rel (0) target = $region69
    $region68: #{tpu_custom_call.1} parent=1 // pred_region
      %94 = dma.done [#allocation6], 256
    $region69: #{tpu_custom_call.1} parent=1 // pred_fallthru
      _
    %v96 = vld [vmem:[%s0] sm:$0xff]
    %v97 = vld [vmem:[%s0 + $0x8] sm:$0xff]
    %v98 = vld [vmem:[%s6] sm:$0x1]
    %v99 = vld [vmem:[%s7] sm:$0x1]
    %vm100 = vcmask 261120
    %v101 = vsel %vm100, %v96, 0.0
    %102 = vadd.xlane.f32.xlu0 %v101
    %v103 = vpop.xlane.xlu0 %102
    %v104 = vsel %vm100, %v97, 0.0
    %105 = vadd.xlane.f32.xlu0 %v104
    %v106 = vpop.xlane.xlu0 %105
    %v107 = vrcp.pop 32.0
    %v108 = vmul.f32 32.0, %v107
    %v109 = vsub.f32 1.0, %v108
    %v110 = vmul.f32 %v107, %v109
    %v111 = vadd.f32 %v107, %v110
    %vm112 = vweird.f32 %v107
    %v113 = vsel %vm112, %v107, %v111
    %v114 = vmul.f32 %v103, %v113
    %v115 = vmul.f32 %v106, %v113
    %v116 = vsub.f32 %v96, %v114
    %v117 = vsub.f32 %v97, %v115
    %v118 = vmul.f32 %v116, %v116
    %v119 = vmul.f32 %v117, %v117
    %v120 = vsel %vm100, %v118, 0.0
    %121 = vadd.xlane.f32.xlu0 %v120
    %v122 = vpop.xlane.xlu0 %121
    %v123 = vsel %vm100, %v119, 0.0
    %124 = vadd.xlane.f32.xlu0 %v123
    %v125 = vpop.xlane.xlu0 %124
    %v126 = vmul.f32 %v122, %v113
    %v127 = vmul.f32 %v125, %v113
    %v128 = vadd.f32 %v126, 1e-05
    %v129 = vadd.f32 %v127, 1e-05
    %v130 = vrsqrt.pop %v128
    %v131 = vmul.f32 %v130, %v128
    %v132 = vmul.f32 %v131, %v130
    %v133 = vmul.f32 0.5, %v132
    %v134 = vsub.f32 1.5, %v133
    %v135 = vmul.f32 %v130, %v134
    %vm136 = vweird.f32 %v128
    %vm137 = vweird.f32 %v130
    %vm138 = vmor %vm136, %vm137
    %v139 = vsel %vm138, %v130, %v135
    %v140 = vrsqrt.pop %v129
    %v141 = vmul.f32 %v140, %v129
    %v142 = vmul.f32 %v141, %v140
    %v143 = vmul.f32 0.5, %v142
    %v144 = vsub.f32 1.5, %v143
    %v145 = vmul.f32 %v140, %v144
    %vm146 = vweird.f32 %v129
    %vm147 = vweird.f32 %v140
    %vm148 = vmor %vm146, %vm147
    %v149 = vsel %vm148, %v140, %v145
    %v150 = vmul.f32 %v116, %v139
    %v151 = vmul.f32 %v117, %v149
    %v153 = vperm.slane %v98, 0
    %v155 = vmul.f32 %v150, %v153
    %v156 = vmul.f32 %v151, %v153
    %v158 = vperm.slane %v99, 0
    %v160 = vadd.f32 %v155, %v158
    %v161 = vadd.f32 %v156, %v158
    %v162 = vpack.c.bf16 %v161, %v160
    %v163 = vld [vmem:[%s1] sm:$0xf]
    %v164 = vld [vmem:[%s1 + $0x4] sm:$0xf]
    %v165 = vld [vmem:[%s1 + $0x8] sm:$0xf]
    %v166 = vld [vmem:[%s1 + $0xc] sm:$0xf]
    %v171 = vunpack.c.l.b16 %v163
    %v172 = vunpack.c.l.b16 %v164
    %v173 = vunpack.c.l.b16 %v165
    %v174 = vunpack.c.l.b16 %v166
    %v175 = vpack.c.b16 %v172, %v171
    %v176 = vpack.c.b16 %v174, %v173
    %v180 = vsel %vm100, %v162, 0
    %182 = vmatpush.bf16.msra.mxu0 0
    %183 = vmatpush.bf16.msra.mxu0 0
    %184 = vmatpush.bf16.msra.mxu0 0
    %185 = vmatpush.bf16.msra.mxu0 0
    %186 = vmatpush.bf16.msra.mxu0 0
    %187 = vmatpush.bf16.msra.mxu0 0
    %188 = vmatpush.bf16.msra.mxu0 %v176
    %189 = vmatpush.bf16.msra.mxu0 %v175
    %190 = vmatmul.bf16.gmra.mxu0 %v180
    %v191 = vpop.f32.mrf.mxu0
    %v192 = vadd.f32 0.0, %v191
    %v193 = vpop.f32.mrf.mxu0
    %v194 = vadd.f32 0.0, %v193
    %195 = vdwg.mxu0
    %v196 = vld [vmem:[%s2] sm:$0xf]
    %v197 = vld [vmem:[%s2 + $0x4] sm:$0xf]
    %v198 = vld [vmem:[%s2 + $0x8] sm:$0xf]
    %v199 = vld [vmem:[%s2 + $0xc] sm:$0xf]
    %v204 = vunpack.c.l.b16 %v196
    %v205 = vunpack.c.l.b16 %v197
    %v206 = vunpack.c.l.b16 %v198
    %v207 = vunpack.c.l.b16 %v199
    %v208 = vpack.c.b16 %v205, %v204
    %v209 = vpack.c.b16 %v207, %v206
    %212 = vmatpush.bf16.msra.mxu0 0
    %213 = vmatpush.bf16.msra.mxu0 0
    %214 = vmatpush.bf16.msra.mxu0 0
    %215 = vmatpush.bf16.msra.mxu0 0
    %216 = vmatpush.bf16.msra.mxu0 0
    %217 = vmatpush.bf16.msra.mxu0 0
    %218 = vmatpush.bf16.msra.mxu0 %v209
    %219 = vmatpush.bf16.msra.mxu0 %v208
    %220 = vmatmul.bf16.gmra.mxu0 %v180
    %v221 = vpop.f32.mrf.mxu0
    %v222 = vadd.f32 0.0, %v221
    %v223 = vpop.f32.mrf.mxu0
    %v224 = vadd.f32 0.0, %v223
    %225 = vdwg.mxu0
    %v226 = vld [vmem:[#allocation2] sm:$0xf]
    %v227 = vld [vmem:[#allocation2 + $0x4] sm:$0xf]
    %v228 = vld [vmem:[#allocation2 + $0x8] sm:$0xf]
    %v229 = vld [vmem:[#allocation2 + $0xc] sm:$0xf]
    %v234 = vunpack.c.l.b16 %v226
    %v235 = vunpack.c.l.b16 %v227
    %v236 = vunpack.c.l.b16 %v228
    %v237 = vunpack.c.l.b16 %v229
    %v238 = vpack.c.b16 %v235, %v234
    %v239 = vpack.c.b16 %v237, %v236
    %242 = vmatpush.bf16.msra.mxu0 0
    %243 = vmatpush.bf16.msra.mxu0 0
    %244 = vmatpush.bf16.msra.mxu0 0
    %245 = vmatpush.bf16.msra.mxu0 0
    %246 = vmatpush.bf16.msra.mxu0 0
    %247 = vmatpush.bf16.msra.mxu0 0
    %248 = vmatpush.bf16.msra.mxu0 %v239
    %249 = vmatpush.bf16.msra.mxu0 %v238
    %250 = vmatmul.bf16.gmra.mxu0 %v180
    %v251 = vpop.f32.mrf.mxu0
    %v252 = vadd.f32 0.0, %v251
    %v253 = vpop.f32.mrf.mxu0
    %v254 = vadd.f32 0.0, %v253
    %255 = vdwg.mxu0
    %v256 = vmul.f32 %v192, 0.35355338
    %v257 = vmul.f32 %v194, 0.35355338
    %v258 = vpack.c.bf16 %v256, %v256
    %v259 = vpack.c.bf16 %v257, %v257
    %v260 = vpack.c.bf16 %v222, %v222
    %v261 = vpack.c.bf16 %v224, %v224
    %v262 = vpack.c.bf16 %v252, %v252
    %v263 = vpack.c.bf16 %v254, %v254
    %v264 = vlaneseq
    %v265 = vshrl.u32 %v264, 7
    %v266 = vlaneseq
    %v267 = vand.u32 %v266, 127
    %vm268 = vcmp.ge.s32.totalorder %v265, %v267
    %v269 = vsel %vm268, 0.0, -1e+10
    %vm270 = vcmask 64512
    %v272 = vsel %vm270, %v258, 0
    %v275 = vsel %vm270, %v260, 0
    %277 = vmatpush.bf16.xpose.msra.mxu0 0
    %278 = vmatpush.bf16.xpose.msra.mxu0 0
    %279 = vmatpush.bf16.xpose.msra.mxu0 0
    %280 = vmatpush.bf16.xpose.msra.mxu0 0
    %281 = vmatpush.bf16.xpose.msra.mxu0 0
    %282 = vmatpush.bf16.xpose.msra.mxu0 0
    %283 = vmatpush.bf16.xpose.msra.mxu0 0
    %284 = vmatpush.bf16.xpose.msra.mxu0 %v275
    %285 = vmatmul.bf16.gmra.mxu0 %v272
    %v286 = vpop.f32.mrf.mxu0
    %v287 = vadd.f32 %v269, %v286
    %v288 = vpop.f32.mrf.mxu0
    %289 = vdwg.mxu0
    %v291 = vsel %vm270, %v259, 0
    %v294 = vsel %vm270, %v261, 0
    %296 = vmatpush.bf16.xpose.msra.mxu0 0
    %297 = vmatpush.bf16.xpose.msra.mxu0 0
    %298 = vmatpush.bf16.xpose.msra.mxu0 0
    %299 = vmatpush.bf16.xpose.msra.mxu0 0
    %300 = vmatpush.bf16.xpose.msra.mxu0 0
    %301 = vmatpush.bf16.xpose.msra.mxu0 0
    %302 = vmatpush.bf16.xpose.msra.mxu0 0
    %303 = vmatpush.bf16.xpose.msra.mxu0 %v294
    %304 = vmatmul.bf16.gmra.mxu0 %v291
    %v305 = vpop.f32.mrf.mxu0
    %v306 = vadd.f32 %v269, %v305
    %v307 = vpop.f32.mrf.mxu0
    %308 = vdwg.mxu0
    %v309 = vsel %vm270, %v287, -inf
    %310 = vmax.xlane.f32.xlu0 %v309
    %v311 = vpop.xlane.xlu0 %310
    %v312 = vsel %vm270, %v306, -inf
    %313 = vmax.xlane.f32.xlu0 %v312
    %v314 = vpop.xlane.xlu0 %313
    %v315 = vsub.f32 %v287, %v311
    %v316 = vsub.f32 %v306, %v314
    %v317 = vmul.f32 %v315, 1.442695
    %v318 = vpow.pop %v317
    %v319 = vmul.f32 %v316, 1.442695
    %v320 = vpow.pop %v319
    %v321 = vsel %vm270, %v318, 0.0
    %322 = vadd.xlane.f32.xlu0 %v321
    %v323 = vpop.xlane.xlu0 %322
    %v324 = vsel %vm270, %v320, 0.0
    %325 = vadd.xlane.f32.xlu0 %v324
    %v326 = vpop.xlane.xlu0 %325
    %v327 = vrcp.pop %v323
    %v328 = vrcp.pop %v326
    %v329 = vmul.f32 %v318, %v327
    %v330 = vmul.f32 %v320, %v328
    %v331 = vpack.c.bf16 %v329, %v329
    %v332 = vpack.c.bf16 %v330, %v330
    %v334 = vsel %vm270, %v331, 0
    %vm336 = vcmask 1043456
    %v338 = vsel %vm336, %v262, 0
    %340 = vmatpush.bf16.msra.mxu0 0
    %341 = vmatpush.bf16.msra.mxu0 0
    %342 = vmatpush.bf16.msra.mxu0 0
    %343 = vmatpush.bf16.msra.mxu0 0
    %344 = vmatpush.bf16.msra.mxu0 0
    %345 = vmatpush.bf16.msra.mxu0 0
    %346 = vmatpush.bf16.msra.mxu0 0
    %347 = vmatpush.bf16.msra.mxu0 %v338
    %348 = vmatmul.bf16.gmra.mxu0 %v334
    %v349 = vpop.f32.mrf.mxu0
    %v350 = vadd.f32 0.0, %v349
    %v351 = vpop.f32.mrf.mxu0
    %352 = vdwg.mxu0
    %v354 = vsel %vm270, %v332, 0
    %v357 = vsel %vm336, %v263, 0
    %359 = vmatpush.bf16.msra.mxu0 0
    %360 = vmatpush.bf16.msra.mxu0 0
    %361 = vmatpush.bf16.msra.mxu0 0
    %362 = vmatpush.bf16.msra.mxu0 0
    %363 = vmatpush.bf16.msra.mxu0 0
    %364 = vmatpush.bf16.msra.mxu0 0
    %365 = vmatpush.bf16.msra.mxu0 0
    %366 = vmatpush.bf16.msra.mxu0 %v357
    %367 = vmatmul.bf16.gmra.mxu0 %v354
    %v368 = vpop.f32.mrf.mxu0
    %v369 = vadd.f32 0.0, %v368
    %v370 = vpop.f32.mrf.mxu0
    %371 = vdwg.mxu0
    %v372 = vpack.c.bf16 %v369, %v350
    %v373 = vld [vmem:[#allocation5] sm:$0xf]
    %v375 = vunpack.c.l.b16 %v258
    %v376 = vpack.c.b16 %v375, %v375
    %377 = vrot.lane.b32.xlu0 %v376, 120
    %v378 = vpop.permute.xlu0 %377
    %v380 = vunpack.c.l.b16 %v260
    %v381 = vpack.c.b16 %v380, %v380
    %382 = vrot.lane.b32.xlu0 %v381, 120
    %v383 = vpop.permute.xlu0 %382
    %v385 = vsel %vm270, %v378, 0
    %v388 = vsel %vm270, %v383, 0
    %390 = vmatpush.bf16.xpose.msra.mxu0 0
    %391 = vmatpush.bf16.xpose.msra.mxu0 0
    %392 = vmatpush.bf16.xpose.msra.mxu0 0
    %393 = vmatpush.bf16.xpose.msra.mxu0 0
    %394 = vmatpush.bf16.xpose.msra.mxu0 0
    %395 = vmatpush.bf16.xpose.msra.mxu0 0
    %396 = vmatpush.bf16.xpose.msra.mxu0 0
    %397 = vmatpush.bf16.xpose.msra.mxu0 %v388
    %398 = vmatmul.bf16.gmra.mxu0 %v385
    %v399 = vpop.f32.mrf.mxu0
    %v400 = vadd.f32 %v269, %v399
    %v401 = vpop.f32.mrf.mxu0
    %402 = vdwg.mxu0
    %v404 = vunpack.c.l.b16 %v259
    %v405 = vpack.c.b16 %v404, %v404
    %406 = vrot.lane.b32.xlu0 %v405, 120
    %v407 = vpop.permute.xlu0 %406
    %v409 = vunpack.c.l.b16 %v261
    %v410 = vpack.c.b16 %v409, %v409
    %411 = vrot.lane.b32.xlu0 %v410, 120
    %v412 = vpop.permute.xlu0 %411
    %v414 = vsel %vm270, %v407, 0
    %v417 = vsel %vm270, %v412, 0
    %419 = vmatpush.bf16.xpose.msra.mxu0 0
    %420 = vmatpush.bf16.xpose.msra.mxu0 0
    %421 = vmatpush.bf16.xpose.msra.mxu0 0
    %422 = vmatpush.bf16.xpose.msra.mxu0 0
    %423 = vmatpush.bf16.xpose.msra.mxu0 0
    %424 = vmatpush.bf16.xpose.msra.mxu0 0
    %425 = vmatpush.bf16.xpose.msra.mxu0 0
    %426 = vmatpush.bf16.xpose.msra.mxu0 %v417
    %427 = vmatmul.bf16.gmra.mxu0 %v414
    %v428 = vpop.f32.mrf.mxu0
    %v429 = vadd.f32 %v269, %v428
    %v430 = vpop.f32.mrf.mxu0
    %431 = vdwg.mxu0
    %v432 = vsel %vm270, %v400, -inf
    %433 = vmax.xlane.f32.xlu0 %v432
    %v434 = vpop.xlane.xlu0 %433
    %v435 = vsel %vm270, %v429, -inf
    %436 = vmax.xlane.f32.xlu0 %v435
    %v437 = vpop.xlane.xlu0 %436
    %v438 = vsub.f32 %v400, %v434
    %v439 = vsub.f32 %v429, %v437
    %v440 = vmul.f32 %v438, 1.442695
    %v441 = vpow.pop %v440
    %v442 = vmul.f32 %v439, 1.442695
    %v443 = vpow.pop %v442
    %v444 = vsel %vm270, %v441, 0.0
    %445 = vadd.xlane.f32.xlu0 %v444
    %v446 = vpop.xlane.xlu0 %445
    %v447 = vsel %vm270, %v443, 0.0
    %448 = vadd.xlane.f32.xlu0 %v447
    %v449 = vpop.xlane.xlu0 %448
    %v450 = vrcp.pop %v446
    %v451 = vrcp.pop %v449
    %v452 = vmul.f32 %v441, %v450
    %v453 = vmul.f32 %v443, %v451
    %v454 = vpack.c.bf16 %v452, %v452
    %v455 = vpack.c.bf16 %v453, %v453
    %v457 = vunpack.c.l.b16 %v262
    %v458 = vpack.c.b16 %v457, %v457
    %459 = vrot.lane.b32.xlu0 %v458, 120
    %v460 = vpop.permute.xlu0 %459
    %v462 = vsel %vm270, %v454, 0
    %v465 = vsel %vm336, %v460, 0
    %467 = vmatpush.bf16.msra.mxu0 0
    %468 = vmatpush.bf16.msra.mxu0 0
    %469 = vmatpush.bf16.msra.mxu0 0
    %470 = vmatpush.bf16.msra.mxu0 0
    %471 = vmatpush.bf16.msra.mxu0 0
    %472 = vmatpush.bf16.msra.mxu0 0
    %473 = vmatpush.bf16.msra.mxu0 0
    %474 = vmatpush.bf16.msra.mxu0 %v465
    %475 = vmatmul.bf16.gmra.mxu0 %v462
    %v476 = vpop.f32.mrf.mxu0
    %v477 = vadd.f32 0.0, %v476
    %v478 = vpop.f32.mrf.mxu0
    %479 = vdwg.mxu0
    %v481 = vunpack.c.l.b16 %v263
    %v482 = vpack.c.b16 %v481, %v481
    %483 = vrot.lane.b32.xlu0 %v482, 120
    %v484 = vpop.permute.xlu0 %483
    %v486 = vsel %vm270, %v455, 0
    %v489 = vsel %vm336, %v484, 0
    %491 = vmatpush.bf16.msra.mxu0 0
    %492 = vmatpush.bf16.msra.mxu0 0
    %493 = vmatpush.bf16.msra.mxu0 0
    %494 = vmatpush.bf16.msra.mxu0 0
    %495 = vmatpush.bf16.msra.mxu0 0
    %496 = vmatpush.bf16.msra.mxu0 0
    %497 = vmatpush.bf16.msra.mxu0 0
    %498 = vmatpush.bf16.msra.mxu0 %v489
    %499 = vmatmul.bf16.gmra.mxu0 %v486
    %v500 = vpop.f32.mrf.mxu0
    %v501 = vadd.f32 0.0, %v500
    %v502 = vpop.f32.mrf.mxu0
    %503 = vdwg.mxu0
    %v504 = vpack.c.bf16 %v501, %v477
    %s505 = scalar_lea.vmem [#allocation5], 4
    %v506 = vld [vmem:[%s505] sm:$0xf]
    %v508 = vsel %vm270, %v504, 0
    %v511 = vsel %vm336, %v506, 0
    %513 = vmatpush.bf16.msra.mxu0 0
    %514 = vmatpush.bf16.msra.mxu0 0
    %515 = vmatpush.bf16.msra.mxu0 0
    %516 = vmatpush.bf16.msra.mxu0 0
    %517 = vmatpush.bf16.msra.mxu0 0
    %518 = vmatpush.bf16.msra.mxu0 0
    %519 = vmatpush.bf16.msra.mxu0 0
    %520 = vmatpush.bf16.msra.mxu0 %v511
    %521 = vmatmul.bf16.gmra.mxu0 %v508
    %v522 = vpop.f32.mrf.mxu0
    %v523 = vadd.f32 0.0, %v522
    %v524 = vpop.f32.mrf.mxu0
    %v525 = vadd.f32 0.0, %v524
    %526 = vdwg.mxu0
    %v528 = vsel %vm270, %v372, 0
    %v531 = vsel %vm336, %v373, 0
    %533 = vmatpush.bf16.msra.mxu0 0
    %534 = vmatpush.bf16.msra.mxu0 0
    %535 = vmatpush.bf16.msra.mxu0 0
    %536 = vmatpush.bf16.msra.mxu0 0
    %537 = vmatpush.bf16.msra.mxu0 0
    %538 = vmatpush.bf16.msra.mxu0 0
    %539 = vmatpush.bf16.msra.mxu0 0
    %540 = vmatpush.bf16.msra.mxu0 %v531
    %541 = vmatmul.bf16.gmra.mxu0 %v528
    %v542 = vpop.f32.mrf.mxu0
    %v543 = vadd.f32 %v523, %v542
    %v544 = vpop.f32.mrf.mxu0
    %v545 = vadd.f32 %v525, %v544
    %546 = vdwg.mxu0
    %547 = vrot.lane.b32.xlu0 %v376, 112
    %v548 = vpop.permute.xlu0 %547
    %549 = vrot.lane.b32.xlu0 %v381, 112
    %v550 = vpop.permute.xlu0 %549
    %v552 = vsel %vm270, %v548, 0
    %v555 = vsel %vm270, %v550, 0
    %557 = vmatpush.bf16.xpose.msra.mxu0 0
    %558 = vmatpush.bf16.xpose.msra.mxu0 0
    %559 = vmatpush.bf16.xpose.msra.mxu0 0
    %560 = vmatpush.bf16.xpose.msra.mxu0 0
    %561 = vmatpush.bf16.xpose.msra.mxu0 0
    %562 = vmatpush.bf16.xpose.msra.mxu0 0
    %563 = vmatpush.bf16.xpose.msra.mxu0 0
    %564 = vmatpush.bf16.xpose.msra.mxu0 %v555
    %565 = vmatmul.bf16.gmra.mxu0 %v552
    %v566 = vpop.f32.mrf.mxu0
    %v567 = vadd.f32 %v269, %v566
    %v568 = vpop.f32.mrf.mxu0
    %569 = vdwg.mxu0
    %570 = vrot.lane.b32.xlu0 %v405, 112
    %v571 = vpop.permute.xlu0 %570
    %572 = vrot.lane.b32.xlu0 %v410, 112
    %v573 = vpop.permute.xlu0 %572
    %v575 = vsel %vm270, %v571, 0
    %v578 = vsel %vm270, %v573, 0
    %580 = vmatpush.bf16.xpose.msra.mxu0 0
    %581 = vmatpush.bf16.xpose.msra.mxu0 0
    %582 = vmatpush.bf16.xpose.msra.mxu0 0
    %583 = vmatpush.bf16.xpose.msra.mxu0 0
    %584 = vmatpush.bf16.xpose.msra.mxu0 0
    %585 = vmatpush.bf16.xpose.msra.mxu0 0
    %586 = vmatpush.bf16.xpose.msra.mxu0 0
    %587 = vmatpush.bf16.xpose.msra.mxu0 %v578
    %588 = vmatmul.bf16.gmra.mxu0 %v575
    %v589 = vpop.f32.mrf.mxu0
    %v590 = vadd.f32 %v269, %v589
    %v591 = vpop.f32.mrf.mxu0
    %592 = vdwg.mxu0
    %v593 = vsel %vm270, %v567, -inf
    %594 = vmax.xlane.f32.xlu0 %v593
    %v595 = vpop.xlane.xlu0 %594
    %v596 = vsel %vm270, %v590, -inf
    %597 = vmax.xlane.f32.xlu0 %v596
    %v598 = vpop.xlane.xlu0 %597
    %v599 = vsub.f32 %v567, %v595
    %v600 = vsub.f32 %v590, %v598
    %v601 = vmul.f32 %v599, 1.442695
    %v602 = vpow.pop %v601
    %v603 = vmul.f32 %v600, 1.442695
    %v604 = vpow.pop %v603
    %v605 = vsel %vm270, %v602, 0.0
    %606 = vadd.xlane.f32.xlu0 %v605
    %v607 = vpop.xlane.xlu0 %606
    %v608 = vsel %vm270, %v604, 0.0
    %609 = vadd.xlane.f32.xlu0 %v608
    %v610 = vpop.xlane.xlu0 %609
    %v611 = vrcp.pop %v607
    %v612 = vrcp.pop %v610
    %v613 = vmul.f32 %v602, %v611
    %v614 = vmul.f32 %v604, %v612
    %v615 = vpack.c.bf16 %v613, %v613
    %v616 = vpack.c.bf16 %v614, %v614
    %617 = vrot.lane.b32.xlu0 %v458, 112
    %v618 = vpop.permute.xlu0 %617
    %v620 = vsel %vm270, %v615, 0
    %v623 = vsel %vm336, %v618, 0
    %625 = vmatpush.bf16.msra.mxu0 0
    %626 = vmatpush.bf16.msra.mxu0 0
    %627 = vmatpush.bf16.msra.mxu0 0
    %628 = vmatpush.bf16.msra.mxu0 0
    %629 = vmatpush.bf16.msra.mxu0 0
    %630 = vmatpush.bf16.msra.mxu0 0
    %631 = vmatpush.bf16.msra.mxu0 0
    %632 = vmatpush.bf16.msra.mxu0 %v623
    %633 = vmatmul.bf16.gmra.mxu0 %v620
    %v634 = vpop.f32.mrf.mxu0
    %v635 = vadd.f32 0.0, %v634
    %v636 = vpop.f32.mrf.mxu0
    %637 = vdwg.mxu0
    %638 = vrot.lane.b32.xlu0 %v482, 112
    %v639 = vpop.permute.xlu0 %638
    %v641 = vsel %vm270, %v616, 0
    %v644 = vsel %vm336, %v639, 0
    %646 = vmatpush.bf16.msra.mxu0 0
    %647 = vmatpush.bf16.msra.mxu0 0
    %648 = vmatpush.bf16.msra.mxu0 0
    %649 = vmatpush.bf16.msra.mxu0 0
    %650 = vmatpush.bf16.msra.mxu0 0
    %651 = vmatpush.bf16.msra.mxu0 0
    %652 = vmatpush.bf16.msra.mxu0 0
    %653 = vmatpush.bf16.msra.mxu0 %v644
    %654 = vmatmul.bf16.gmra.mxu0 %v641
    %v655 = vpop.f32.mrf.mxu0
    %v656 = vadd.f32 0.0, %v655
    %v657 = vpop.f32.mrf.mxu0
    %658 = vdwg.mxu0
    %v659 = vpack.c.bf16 %v656, %v635
    %s660 = scalar_lea.vmem [#allocation5], 8
    %v661 = vld [vmem:[%s660] sm:$0xf]
    %v663 = vsel %vm270, %v659, 0
    %v666 = vsel %vm336, %v661, 0
    %668 = vmatpush.bf16.msra.mxu0 0
    %669 = vmatpush.bf16.msra.mxu0 0
    %670 = vmatpush.bf16.msra.mxu0 0
    %671 = vmatpush.bf16.msra.mxu0 0
    %672 = vmatpush.bf16.msra.mxu0 0
    %673 = vmatpush.bf16.msra.mxu0 0
    %674 = vmatpush.bf16.msra.mxu0 0
    %675 = vmatpush.bf16.msra.mxu0 %v666
    %676 = vmatmul.bf16.gmra.mxu0 %v663
    %v677 = vpop.f32.mrf.mxu0
    %v678 = vadd.f32 0.0, %v677
    %v679 = vpop.f32.mrf.mxu0
    %v680 = vadd.f32 0.0, %v679
    %681 = vdwg.mxu0
    %v682 = vadd.f32 %v543, %v678
    %v683 = vadd.f32 %v545, %v680
    %684 = vrot.lane.b32.xlu0 %v376, 104
    %v685 = vpop.permute.xlu0 %684
    %686 = vrot.lane.b32.xlu0 %v381, 104
    %v687 = vpop.permute.xlu0 %686
    %v689 = vsel %vm270, %v685, 0
    %v692 = vsel %vm270, %v687, 0
    %694 = vmatpush.bf16.xpose.msra.mxu0 0
    %695 = vmatpush.bf16.xpose.msra.mxu0 0
    %696 = vmatpush.bf16.xpose.msra.mxu0 0
    %697 = vmatpush.bf16.xpose.msra.mxu0 0
    %698 = vmatpush.bf16.xpose.msra.mxu0 0
    %699 = vmatpush.bf16.xpose.msra.mxu0 0
    %700 = vmatpush.bf16.xpose.msra.mxu0 0
    %701 = vmatpush.bf16.xpose.msra.mxu0 %v692
    %702 = vmatmul.bf16.gmra.mxu0 %v689
    %v703 = vpop.f32.mrf.mxu0
    %v704 = vadd.f32 %v269, %v703
    %v705 = vpop.f32.mrf.mxu0
    %706 = vdwg.mxu0
    %707 = vrot.lane.b32.xlu0 %v405, 104
    %v708 = vpop.permute.xlu0 %707
    %709 = vrot.lane.b32.xlu0 %v410, 104
    %v710 = vpop.permute.xlu0 %709
    %v712 = vsel %vm270, %v708, 0
    %v715 = vsel %vm270, %v710, 0
    %717 = vmatpush.bf16.xpose.msra.mxu0 0
    %718 = vmatpush.bf16.xpose.msra.mxu0 0
    %719 = vmatpush.bf16.xpose.msra.mxu0 0
    %720 = vmatpush.bf16.xpose.msra.mxu0 0
    %721 = vmatpush.bf16.xpose.msra.mxu0 0
    %722 = vmatpush.bf16.xpose.msra.mxu0 0
    %723 = vmatpush.bf16.xpose.msra.mxu0 0
    %724 = vmatpush.bf16.xpose.msra.mxu0 %v715
    %725 = vmatmul.bf16.gmra.mxu0 %v712
    %v726 = vpop.f32.mrf.mxu0
    %v727 = vadd.f32 %v269, %v726
    %v728 = vpop.f32.mrf.mxu0
    %729 = vdwg.mxu0
    %v730 = vsel %vm270, %v704, -inf
    %731 = vmax.xlane.f32.xlu0 %v730
    %v732 = vpop.xlane.xlu0 %731
    %v733 = vsel %vm270, %v727, -inf
    %734 = vmax.xlane.f32.xlu0 %v733
    %v735 = vpop.xlane.xlu0 %734
    %v736 = vsub.f32 %v704, %v732
    %v737 = vsub.f32 %v727, %v735
    %v738 = vmul.f32 %v736, 1.442695
    %v739 = vpow.pop %v738
    %v740 = vmul.f32 %v737, 1.442695
    %v741 = vpow.pop %v740
    %v742 = vsel %vm270, %v739, 0.0
    %743 = vadd.xlane.f32.xlu0 %v742
    %v744 = vpop.xlane.xlu0 %743
    %v745 = vsel %vm270, %v741, 0.0
    %746 = vadd.xlane.f32.xlu0 %v745
    %v747 = vpop.xlane.xlu0 %746
    %v748 = vrcp.pop %v744
    %v749 = vrcp.pop %v747
    %v750 = vmul.f32 %v739, %v748
    %v751 = vmul.f32 %v741, %v749
    %v752 = vpack.c.bf16 %v750, %v750
    %v753 = vpack.c.bf16 %v751, %v751
    %754 = vrot.lane.b32.xlu0 %v458, 104
    %v755 = vpop.permute.xlu0 %754
    %v757 = vsel %vm270, %v752, 0
    %v760 = vsel %vm336, %v755, 0
    %762 = vmatpush.bf16.msra.mxu0 0
    %763 = vmatpush.bf16.msra.mxu0 0
    %764 = vmatpush.bf16.msra.mxu0 0
    %765 = vmatpush.bf16.msra.mxu0 0
    %766 = vmatpush.bf16.msra.mxu0 0
    %767 = vmatpush.bf16.msra.mxu0 0
    %768 = vmatpush.bf16.msra.mxu0 0
    %769 = vmatpush.bf16.msra.mxu0 %v760
    %770 = vmatmul.bf16.gmra.mxu0 %v757
    %v771 = vpop.f32.mrf.mxu0
    %v772 = vadd.f32 0.0, %v771
    %v773 = vpop.f32.mrf.mxu0
    %774 = vdwg.mxu0
    %775 = vrot.lane.b32.xlu0 %v482, 104
    %v776 = vpop.permute.xlu0 %775
    %v778 = vsel %vm270, %v753, 0
    %v781 = vsel %vm336, %v776, 0
    %783 = vmatpush.bf16.msra.mxu0 0
    %784 = vmatpush.bf16.msra.mxu0 0
    %785 = vmatpush.bf16.msra.mxu0 0
    %786 = vmatpush.bf16.msra.mxu0 0
    %787 = vmatpush.bf16.msra.mxu0 0
    %788 = vmatpush.bf16.msra.mxu0 0
    %789 = vmatpush.bf16.msra.mxu0 0
    %790 = vmatpush.bf16.msra.mxu0 %v781
    %791 = vmatmul.bf16.gmra.mxu0 %v778
    %v792 = vpop.f32.mrf.mxu0
    %v793 = vadd.f32 0.0, %v792
    %v794 = vpop.f32.mrf.mxu0
    %795 = vdwg.mxu0
    %v796 = vpack.c.bf16 %v793, %v772
    %s797 = scalar_lea.vmem [#allocation5], 12
    %v798 = vld [vmem:[%s797] sm:$0xf]
    %v800 = vsel %vm270, %v796, 0
    %v803 = vsel %vm336, %v798, 0
    %805 = vmatpush.bf16.msra.mxu0 0
    %806 = vmatpush.bf16.msra.mxu0 0
    %807 = vmatpush.bf16.msra.mxu0 0
    %808 = vmatpush.bf16.msra.mxu0 0
    %809 = vmatpush.bf16.msra.mxu0 0
    %810 = vmatpush.bf16.msra.mxu0 0
    %811 = vmatpush.bf16.msra.mxu0 0
    %812 = vmatpush.bf16.msra.mxu0 %v803
    %813 = vmatmul.bf16.gmra.mxu0 %v800
    %v814 = vpop.f32.mrf.mxu0
    %v815 = vadd.f32 0.0, %v814
    %v816 = vpop.f32.mrf.mxu0
    %v817 = vadd.f32 0.0, %v816
    %818 = vdwg.mxu0
    %v819 = vadd.f32 %v682, %v815
    %v820 = vadd.f32 %v683, %v817
    %v821 = vadd.f32 %v96, %v819
    %v822 = vadd.f32 %v97, %v820
    %v823 = vld [vmem:[%s5] sm:$0x1]
    %v825 = vperm.slane %v823, 0
    %v827 = vadd.f32 %v821, %v825
    %v828 = vadd.f32 %v822, %v825
    %v829 = vld [vmem:[%s8] sm:$0x1]
    %v830 = vld [vmem:[%s9] sm:$0x1]
    %v831 = vsel %vm100, %v827, 0.0
    %832 = vadd.xlane.f32.xlu0 %v831
    %v833 = vpop.xlane.xlu0 %832
    %v834 = vsel %vm100, %v828, 0.0
    %835 = vadd.xlane.f32.xlu0 %v834
    %v836 = vpop.xlane.xlu0 %835
    %v837 = vmul.f32 %v833, %v113
    %v838 = vmul.f32 %v836, %v113
    %v839 = vsub.f32 %v827, %v837
    %v840 = vsub.f32 %v828, %v838
    %v841 = vmul.f32 %v839, %v839
    %v842 = vmul.f32 %v840, %v840
    %v843 = vsel %vm100, %v841, 0.0
    %844 = vadd.xlane.f32.xlu0 %v843
    %v845 = vpop.xlane.xlu0 %844
    %v846 = vsel %vm100, %v842, 0.0
    %847 = vadd.xlane.f32.xlu0 %v846
    %v848 = vpop.xlane.xlu0 %847
    %v849 = vmul.f32 %v845, %v113
    %v850 = vmul.f32 %v848, %v113
    %v851 = vadd.f32 %v849, 1e-05
    %v852 = vadd.f32 %v850, 1e-05
    %v853 = vrsqrt.pop %v851
    %v854 = vmul.f32 %v853, %v851
    %v855 = vmul.f32 %v854, %v853
    %v856 = vmul.f32 0.5, %v855
    %v857 = vsub.f32 1.5, %v856
    %v858 = vmul.f32 %v853, %v857
    %vm859 = vweird.f32 %v851
    %vm860 = vweird.f32 %v853
    %vm861 = vmor %vm859, %vm860
    %v862 = vsel %vm861, %v853, %v858
    %v863 = vrsqrt.pop %v852
    %v864 = vmul.f32 %v863, %v852
    %v865 = vmul.f32 %v864, %v863
    %v866 = vmul.f32 0.5, %v865
    %v867 = vsub.f32 1.5, %v866
    %v868 = vmul.f32 %v863, %v867
    %vm869 = vweird.f32 %v852
    %vm870 = vweird.f32 %v863
    %vm871 = vmor %vm869, %vm870
    %v872 = vsel %vm871, %v863, %v868
    %v873 = vmul.f32 %v839, %v862
    %v874 = vmul.f32 %v840, %v872
    %v876 = vperm.slane %v829, 0
    %v878 = vmul.f32 %v873, %v876
    %v879 = vmul.f32 %v874, %v876
    %v881 = vperm.slane %v830, 0
    %v883 = vadd.f32 %v878, %v881
    %v884 = vadd.f32 %v879, %v881
    %v885 = vpack.c.bf16 %v884, %v883
    %v886 = vld [vmem:[#allocation7] sm:$0xf]
    %v887 = vld [vmem:[#allocation7 + $0x4] sm:$0xf]
    %v888 = vld [vmem:[#allocation7 + $0x8] sm:$0xf]
    %v889 = vld [vmem:[#allocation7 + $0xc] sm:$0xf]
    %v890 = vld [vmem:[%s11] sm:$0x1]
    %v892 = vperm.slane %v890, 0
    %v898 = vunpack.c.l.b16 %v886
    %v899 = vunpack.c.l.b16 %v887
    %v900 = vunpack.c.l.b16 %v888
    %v901 = vunpack.c.l.b16 %v889
    %v902 = vpack.c.b16 %v899, %v898
    %v903 = vpack.c.b16 %v901, %v900
    %v907 = vsel %vm100, %v885, 0
    %909 = vmatpush.bf16.msra.mxu0 0
    %910 = vmatpush.bf16.msra.mxu0 0
    %911 = vmatpush.bf16.msra.mxu0 0
    %912 = vmatpush.bf16.msra.mxu0 0
    %913 = vmatpush.bf16.msra.mxu0 0
    %914 = vmatpush.bf16.msra.mxu0 0
    %915 = vmatpush.bf16.msra.mxu0 %v903
    %916 = vmatpush.bf16.msra.mxu0 %v902
    %917 = vmatmul.bf16.gmra.mxu0 %v907
    %v918 = vpop.f32.mrf.mxu0
    %v919 = vadd.f32 %v892, %v918
    %v920 = vpop.f32.mrf.mxu0
    %v921 = vadd.f32 %v892, %v920
    %922 = vdwg.mxu0
    %v923 = vmul.f32 %v919, 0.5
    %v924 = vmul.f32 %v921, 0.5
    %v925 = vmul.f32 %v919, 0.70710677
    %v926 = vmul.f32 %v921, 0.70710677
    %v927 = vmul.f32 %v925, %v925
    %v928 = vmin.f32 16.0, %v927
    %v929 = vmul.f32 %v928, 2.1237322e-06
    %v930 = vadd.f32 %v929, 0.00028619796
    %v931 = vmul.f32 %v928, %v930
    %v932 = vadd.f32 %v931, 0.0036580483
    %v933 = vmul.f32 %v928, %v932
    %v934 = vadd.f32 %v933, 0.05243302
    %v935 = vmul.f32 %v928, %v934
    %v936 = vadd.f32 %v935, 0.18741608
    %v937 = vmul.f32 %v928, %v936
    %v938 = vadd.f32 %v937, 1.1283791
    %v939 = vmul.f32 %v925, %v938
    %v940 = vmul.f32 %v928, 3.8918573e-05
    %v941 = vadd.f32 %v940, 0.001143296
    %v942 = vmul.f32 %v928, %v941
    %v943 = vadd.f32 %v942, 0.014752088
    %v944 = vmul.f32 %v928, %v943
    %v945 = vadd.f32 %v944, 0.112945676
    %v946 = vmul.f32 %v928, %v945
    %v947 = vadd.f32 %v946, 0.4994258
    %v948 = vmul.f32 %v928, %v947
    %v949 = vadd.f32 %v948, 1.0
    %v950 = vrcp.pop %v949
    %v951 = vmul.f32 %v949, %v950
    %v952 = vsub.f32 1.0, %v951
    %v953 = vmul.f32 %v950, %v952
    %v954 = vadd.f32 %v950, %v953
    %vm955 = vweird.f32 %v949
    %vm956 = vweird.f32 %v950
    %vm957 = vmor %vm955, %vm956
    %v958 = vsel %vm957, %v950, %v954
    %v959 = vand.u32 2147483647, %v949
    %vm960 = vcmp.eq.f32.partialorder %v959, 8.507059e+37
    %v961 = vand.u32 %v949, 2147483648
    %v962 = vor.u32 1.1754944e-38, %v961
    %v963 = vsel %vm960, %v962, %v958
    %v964 = vmul.f32 %v939, %v963
    %v965 = vmin.f32 %v964, 1.0
    %v966 = vmax.f32 %v965, -1.0
    %v967 = vmul.f32 %v926, %v926
    %v968 = vmin.f32 16.0, %v967
    %v969 = vmul.f32 %v968, 2.1237322e-06
    %v970 = vadd.f32 %v969, 0.00028619796
    %v971 = vmul.f32 %v968, %v970
    %v972 = vadd.f32 %v971, 0.0036580483
    %v973 = vmul.f32 %v968, %v972
    %v974 = vadd.f32 %v973, 0.05243302
    %v975 = vmul.f32 %v968, %v974
    %v976 = vadd.f32 %v975, 0.18741608
    %v977 = vmul.f32 %v968, %v976
    %v978 = vadd.f32 %v977, 1.1283791
    %v979 = vmul.f32 %v926, %v978
    %v980 = vmul.f32 %v968, 3.8918573e-05
    %v981 = vadd.f32 %v980, 0.001143296
    %v982 = vmul.f32 %v968, %v981
    %v983 = vadd.f32 %v982, 0.014752088
    %v984 = vmul.f32 %v968, %v983
    %v985 = vadd.f32 %v984, 0.112945676
    %v986 = vmul.f32 %v968, %v985
    %v987 = vadd.f32 %v986, 0.4994258
    %v988 = vmul.f32 %v968, %v987
    %v989 = vadd.f32 %v988, 1.0
    %v990 = vrcp.pop %v989
    %v991 = vmul.f32 %v989, %v990
    %v992 = vsub.f32 1.0, %v991
    %v993 = vmul.f32 %v990, %v992
    %v994 = vadd.f32 %v990, %v993
    %vm995 = vweird.f32 %v989
    %vm996 = vweird.f32 %v990
    %vm997 = vmor %vm995, %vm996
    %v998 = vsel %vm997, %v990, %v994
    %v999 = vand.u32 2147483647, %v989
    %vm1000 = vcmp.eq.f32.partialorder %v999, 8.507059e+37
    %v1001 = vand.u32 %v989, 2147483648
    %v1002 = vor.u32 1.1754944e-38, %v1001
    %v1003 = vsel %vm1000, %v1002, %v998
    %v1004 = vmul.f32 %v979, %v1003
    %v1005 = vmin.f32 %v1004, 1.0
    %v1006 = vmax.f32 %v1005, -1.0
    %v1007 = vadd.f32 %v966, 1.0
    %v1008 = vadd.f32 %v1006, 1.0
    %v1009 = vmul.f32 %v923, %v1007
    %v1010 = vmul.f32 %v924, %v1008
    %v1011 = vpack.c.bf16 %v1010, %v1009
    %v1012 = vld [vmem:[%s12] sm:$0xf]
    %v1013 = vld [vmem:[%s12 + $0x4] sm:$0xf]
    %v1014 = vld [vmem:[%s12 + $0x8] sm:$0xf]
    %v1015 = vld [vmem:[%s12 + $0xc] sm:$0xf]
    %v1016 = vld [vmem:[%s12 + $0x10] sm:$0xf]
    %v1017 = vld [vmem:[%s12 + $0x14] sm:$0xf]
    %v1018 = vld [vmem:[%s12 + $0x18] sm:$0xf]
    %v1019 = vld [vmem:[%s12 + $0x1c] sm:$0xf]
    %v1020 = vld [vmem:[%s13] sm:$0x1]
    %v1022 = vperm.slane %v1020, 0
    %v1032 = vunpack.c.l.b16 %v1012
    %v1033 = vunpack.c.l.b16 %v1013
    %v1034 = vunpack.c.l.b16 %v1014
    %v1035 = vunpack.c.l.b16 %v1015
    %v1036 = vunpack.c.l.b16 %v1016
    %v1037 = vunpack.c.l.b16 %v1017
    %v1038 = vunpack.c.l.b16 %v1018
    %v1039 = vunpack.c.l.b16 %v1019
    %v1040 = vpack.c.b16 %v1033, %v1032
    %v1041 = vpack.c.b16 %v1035, %v1034
    %v1042 = vpack.c.b16 %v1037, %v1036
    %v1043 = vpack.c.b16 %v1039, %v1038
    %vm1048 = vcmask 523264
    %v1050 = vsel %vm1048, %v1011, 0
    %1052 = vmatpush.bf16.msra.mxu0 0
    %1053 = vmatpush.bf16.msra.mxu0 0
    %1054 = vmatpush.bf16.msra.mxu0 0
    %1055 = vmatpush.bf16.msra.mxu0 0
    %1056 = vmatpush.bf16.msra.mxu0 %v1043
    %1057 = vmatpush.bf16.msra.mxu0 %v1042
    %1058 = vmatpush.bf16.msra.mxu0 %v1041
    %1059 = vmatpush.bf16.msra.mxu0 %v1040
    %1060 = vmatmul.bf16.gmra.mxu0 %v1050
    %v1061 = vpop.f32.mrf.mxu0
    %v1062 = vadd.f32 %v1022, %v1061
    %v1063 = vpop.f32.mrf.mxu0
    %v1064 = vadd.f32 %v1022, %v1063
    %1065 = vdwg.mxu0
    %v1066 = vadd.f32 %v827, %v1062
    %v1067 = vadd.f32 %v828, %v1064
    %1068 = vst.msk [vmem:[#allocation8] sm:$0xff] %vm100, %v1066
    %1069 = vst.msk [vmem:[#allocation8 + $0x8] sm:$0xff] %vm100, %v1067
    // Predicated region
    $region70: #{tpu_custom_call.1} parent=1 // pred_check
      _
    $region71: #{tpu_custom_call.1} parent=1 // pred_check_branch
      %1071 = sbr.rel (0) target = $region73
    $region72: #{tpu_custom_call.1} parent=1 // pred_region
      %1073 = vsyncadd [#allocation4], 0
      %s1074 = sshll.u32 [#allocation8], 4
      %s1075 = int_to_ptr.vmem [resolvable:$true] %s1074
      %s1076 = sshll.u32 %s14, 4
      %s1077 = int_to_ptr.hbm [resolvable:$true] %s1076
      %1082 = dma.vmem_to_hbm [thread:$0]  %s1075, 256, %s1077, [#allocation4], 128, 128, 8
    $region73: #{tpu_custom_call.1} parent=1 // pred_fallthru
      _
    // Predicated region
    $region74: #{tpu_custom_call.1} parent=1 // pred_check
      _
    $region75: #{tpu_custom_call.1} parent=1 // pred_check_branch
      %1084 = sbr.rel (0) target = $region77
    $region76: #{tpu_custom_call.1} parent=1 // pred_region
      %1086 = dma.done [#allocation4], 256
    $region77: #{tpu_custom_call.1} parent=1 // pred_fallthru
      _
    %1087 = vsyncpa [#allocation3], 1
    %1088 = vsyncpa [#allocation6], 1
    %1089 = vsyncpa [#allocation4], 1

</llo_original>
